<compile_context>
chip_gen: v7x
topology: tpu7x:2x2x1
jax: 0.10.0
libtpu: 0.0.40
codegen_flags: <defaults>
</compile_context>

<pallas_src>
import functools
import math

import jax
import jax.numpy as jnp
from jax.experimental import pallas as pl
from jax.experimental.pallas import tpu as pltpu


def _conv_tap_kernel(x_ref, w_ref, b_ref, o_ref, *, ks, wp, s_blk):
    """One (batch, row-tile) grid step.

    x_ref: (1, 1, cin, s_blk + halo)  flattened (rows+2p, Wp) tile incl. halo
    w_ref: (ks*ks, cout, cin)         conv taps, tap-major (dy, dx)  (resident)
    b_ref: (cout, 1)                  bias, f32                      (resident)
    o_ref: (1, cout, s_blk)           output block, flat over (rows, Wp)
    """
    cout = o_ref.shape[1]
    acc = jnp.zeros((cout, s_blk), jnp.float32)
    # In-kernel im2col: each tap is a static lane-offset window of the tile.
    # ks*ks small MXU matmuls (contraction over cin), accumulated in f32.
    for dy in range(ks):
        for dx in range(ks):
            tap = dy * ks + dx
            start = dy * wp + dx
            rhs = x_ref[0, 0, :, start:start + s_blk]          # (cin, s_blk)
            acc += jnp.dot(w_ref[tap], rhs,
                           preferred_element_type=jnp.float32)
    o_ref[0, :, :] = (acc + b_ref[...]).astype(o_ref.dtype)


def _pick_rows_blk(h, wp, per_row_bytes, budget_bytes, n_batch):
    """Largest row tile such that the flat block (rows*Wp) is 128-lane aligned,
    divides H, fits the VMEM budget, and (for N==1) leaves >=2 grid steps so
    both v7x TensorCores get work."""
    g = math.gcd(wp, 128)
    step = 128 // g                     # rows per 128-lane-aligned flat chunk
    aligned = [r for r in range(step, h + 1, step) if h % r == 0]
    if not aligned:
        return h                        # full-dim escape: block == whole H*Wp
    fitting = [r for r in aligned if r * per_row_bytes <= budget_bytes]
    if not fitting:
        return min(aligned)             # smallest legal tile; may rely on limit
    if n_batch == 1:
        two_plus = [r for r in fitting if h // r >= 2]
        if two_plus:
            return max(two_plus)
    return max(fitting)


def proyection_block(x_nchw, weight, bias, ks, *, compute_dtype=jnp.bfloat16,
                     out_dtype=None):
    """Forward pass of ProyectionBlock.

    x_nchw : (N, Cin, H, W)
    weight : (Cout, Cin, ks, ks)   (PyTorch Conv2d layout)
    bias   : (Cout,)
    compute_dtype : operand dtype fed to the MXU (accumulation is always f32).
                    bf16 (default) halves DMA bytes on all generations; pass
                    jnp.float32 for exact accuracy.
    returns (N, Cout, H, W)
    """
    assert ks % 2 == 1, "ProyectionBlock Pallas kernel assumes odd kernel size"
    n, cin, h, w = x_nchw.shape
    cout = weight.shape[0]
    p = ks // 2
    assert h > p and w > p, "reflect padding requires H, W > ks//2"
    if compute_dtype is None:
        compute_dtype = x_nchw.dtype
    if out_dtype is None:
        out_dtype = x_nchw.dtype

    hp, wp = h + 2 * p, w + 2 * p
    flat_len = hp * wp + 2 * p          # flattened padded image + lane guards
    s_full = h * wp                     # flat output spatial length per batch
    halo = 2 * p * wp + 2 * p           # extra lanes a tile needs for its taps

    # ---- VMEM budget & tile sizing (per-generation) ------------------------
    in_bytes = jnp.dtype(compute_dtype).itemsize
    out_bytes = jnp.dtype(out_dtype).itemsize
    try:                                # 128 MiB on v5e/v6e, 64 MiB on v7x
        info = pltpu.get_tpu_info()
        vmem_cap = int(getattr(info, "vmem_capacity_bytes", 0)) or (64 << 20)
    except Exception:                   # conservative fallback
        vmem_cap = 64 << 20
    vmem_limit = min(int(0.75 * vmem_cap), 96 << 20)
    budget = int(0.50 * vmem_cap)       # headroom for compiler scratch/spills

    # Per output row: double-buffered input rows + output rows, f32 acc, tap tmp.
    per_row = wp * (2 * cin * in_bytes + 2 * cout * out_bytes
                    + cout * 4 + cin * in_bytes)
    # Fixed: halo part of the input tile + resident weights/bias (2x buffers).
    fixed = (2 * cin * halo * in_bytes
             + 2 * (ks * ks * cout * cin * in_bytes + cout * 4))
    rows_blk = _pick_rows_blk(h, wp, per_row, budget - fixed, n)
    row_tiles = h // rows_blk
    s_blk = rows_blk * wp

    # ---- glue (cheap, ~1x input): reflect pad, flatten, cut row tiles ------
    x_p = jnp.pad(x_nchw, ((0, 0), (0, 0), (p, p), (p, p)),
                  mode="reflect").astype(compute_dtype)          # (N,Cin,Hp,Wp)
    x_flat = jnp.pad(x_p.reshape(n, cin, hp * wp),
                     ((0, 0), (0, 0), (p, p)))                   # lane guards
    # Non-overlapping row tiles + halo -> static in-kernel tap slices, and the
    # per-step DMA is exactly one spatial tile of x plus its ks//2 halo.
    x_tiles = jnp.stack(
        [x_flat[:, :, r * s_blk: r * s_blk + s_blk + halo]
         for r in range(row_tiles)],
        axis=1)                                    # (N, row_tiles, Cin, s_blk+halo)

    # taps, tap-major (dy, dx): (ks*ks, Cout, Cin)
    w_taps = jnp.transpose(weight, (2, 3, 0, 1)).reshape(
        ks * ks, cout, cin).astype(compute_dtype)
    b2 = bias.reshape(cout, 1).astype(jnp.float32)

    kernel = functools.partial(_conv_tap_kernel, ks=ks, wp=wp, s_blk=s_blk)
    y_flat = pl.pallas_call(
        kernel,
        out_shape=jax.ShapeDtypeStruct((n, cout, s_full), out_dtype),
        grid_spec=pltpu.PrefetchScalarGridSpec(
            num_scalar_prefetch=0,
            grid=(n, row_tiles),
            in_specs=[
                # one row tile (+halo) of the padded image per step
                pl.BlockSpec((1, 1, cin, s_blk + halo),
                             lambda b, r: (b, r, 0, 0)),
                # weights / bias: constant index map -> fetched once, resident
                pl.BlockSpec((ks * ks, cout, cin), lambda b, r: (0, 0, 0)),
                pl.BlockSpec((cout, 1), lambda b, r: (0, 0)),
            ],
            out_specs=pl.BlockSpec((1, cout, s_blk), lambda b, r: (b, 0, r)),
        ),
        compiler_params=pltpu.CompilerParams(
            dimension_semantics=("parallel", "parallel"),
            vmem_limit_bytes=vmem_limit),
    )(x_tiles, w_taps, b2)

    # (N, Cout, H*Wp) is already NCHW up to the p garbage border columns:
    # reshape is free, the column slice is the only output-sized XLA pass.
    return y_flat.reshape(n, cout, h, wp)[:, :, :, p:p + w]


def _reference(x_nchw, weight, bias, ks):
    """Pure-JAX reference (reflect pad + conv), for correctness checking."""
    pad = ks // 2
    xp = jnp.pad(x_nchw, ((0, 0), (0, 0), (pad, pad), (pad, pad)),
                 mode="reflect")
    y = jax.lax.conv_general_dilated(
        xp, weight, window_strides=(1, 1), padding="VALID",
        dimension_numbers=("NCHW", "OIHW", "NCHW"))
    return y + bias.reshape(1, -1, 1, 1)


if __name__ == "__main__":
    # opt.proyection_kernel = 3
    N, CIN, COUT, H, W, KS = 2, 4, 8, 16, 16, 3

    key = jax.random.PRNGKey(0)
    kx, kw, kb = jax.random.split(key, 3)

    x = jax.random.normal(kx, (N, CIN, H, W), dtype=jnp.float32)
    # Deterministic synthetic parameters matching nn.Conv2d(CIN, COUT, KS).
    weight = jax.random.normal(kw, (COUT, CIN, KS, KS), dtype=jnp.float32) * 0.1
    bias = jax.random.normal(kb, (COUT,), dtype=jnp.float32) * 0.1

    y_ref = _reference(x, weight, bias, KS)

    # f32 operands: exact-tolerance check
    y32 = jax.block_until_ready(
        proyection_block(x, weight, bias, KS, compute_dtype=jnp.float32))
    assert y32.shape == (N, COUT, H, W)
    assert jnp.allclose(y32, y_ref, atol=1e-4, rtol=1e-4), \
        "mismatch vs reference conv (f32)"

    # default bf16 operands (f32 accumulation): loose tolerance
    ybf = jax.block_until_ready(proyection_block(x, weight, bias, KS))
    assert ybf.shape == (N, COUT, H, W)
    assert jnp.allclose(ybf, y_ref, atol=1e-1, rtol=1e-1), \
        "mismatch vs reference conv (bf16)"

    print("KERNEL_OK")
</pallas_src>

<mosaic_0001>
module attributes {stable_mosaic.version = 11 : i64} {
  func.func @_conv_tap_kernel(%arg0: i32, %arg1: i32, %arg2: memref<1x1x4x326xf32, #tpu.memory_space<vmem>>, %arg3: memref<9x8x4xf32, #tpu.memory_space<vmem>>, %arg4: memref<8x1xf32, #tpu.memory_space<vmem>>, %arg5: memref<1x8x288xf32, #tpu.memory_space<vmem>>) attributes {dimension_semantics = [#tpu.dimension_semantics<parallel>, #tpu.dimension_semantics<parallel>], iteration_bounds = array<i64: 2, 1>, scalar_prefetch = 0 : i64, scratch_operands = 0 : i64, tpu.core_type = #tpu.core_type<tc>, window_params = [{transform_indices = @transform_0, window_bounds = array<i64: 1, 1, 4, 326>}, {pipeline_mode = #tpu.pipeline_mode<synchronous>, transform_indices = @transform_1, window_bounds = array<i64: 9, 8, 4>}, {pipeline_mode = #tpu.pipeline_mode<synchronous>, transform_indices = @transform_2, window_bounds = array<i64: 8, 1>}, {transform_indices = @transform_3, window_bounds = array<i64: 1, 8, 288>}]} {
    %cst = arith.constant 0.000000e+00 : f32
    %0 = vector.broadcast %cst : f32 to vector<8x288xf32>
    %c0 = arith.constant 0 : index
    %c0_0 = arith.constant 0 : index
    %c0_1 = arith.constant 0 : index
    %c0_2 = arith.constant 0 : index
    %1 = vector.load %arg2[%c0, %c0_0, %c0_1, %c0_2] : memref<1x1x4x326xf32, #tpu.memory_space<vmem>>, vector<1x1x4x288xf32>
    %2 = vector.shape_cast %1 : vector<1x1x4x288xf32> to vector<4x288xf32>
    %c0_3 = arith.constant 0 : index
    %c0_4 = arith.constant 0 : index
    %c0_5 = arith.constant 0 : index
    %3 = vector.load %arg3[%c0_3, %c0_4, %c0_5] : memref<9x8x4xf32, #tpu.memory_space<vmem>>, vector<1x8x4xf32>
    %4 = vector.shape_cast %3 : vector<1x8x4xf32> to vector<8x4xf32>
    %cst_6 = arith.constant dense<0.000000e+00> : vector<8x288xf32>
    %5 = tpu.matmul %4, %2, %cst_6 {dimension_numbers = #tpu.dot_dimension_numbers<[1], [0], [0], [1], [0, 0, 1, 1], [], []>} : vector<8x4xf32>, vector<4x288xf32>, vector<8x288xf32> -> vector<8x288xf32>
    %6 = arith.addf %0, %5 : vector<8x288xf32>
    %c0_7 = arith.constant 0 : index
    %c0_8 = arith.constant 0 : index
    %c0_9 = arith.constant 0 : index
    %c1 = arith.constant 1 : index
    %7 = vector.load %arg2[%c0_7, %c0_8, %c0_9, %c1] : memref<1x1x4x326xf32, #tpu.memory_space<vmem>>, vector<1x1x4x288xf32>
    %8 = vector.shape_cast %7 : vector<1x1x4x288xf32> to vector<4x288xf32>
    %c1_10 = arith.constant 1 : index
    %c0_11 = arith.constant 0 : index
    %c0_12 = arith.constant 0 : index
    %9 = vector.load %arg3[%c1_10, %c0_11, %c0_12] : memref<9x8x4xf32, #tpu.memory_space<vmem>>, vector<1x8x4xf32>
    %10 = vector.shape_cast %9 : vector<1x8x4xf32> to vector<8x4xf32>
    %cst_13 = arith.constant dense<0.000000e+00> : vector<8x288xf32>
    %11 = tpu.matmul %10, %8, %cst_13 {dimension_numbers = #tpu.dot_dimension_numbers<[1], [0], [0], [1], [0, 0, 1, 1], [], []>} : vector<8x4xf32>, vector<4x288xf32>, vector<8x288xf32> -> vector<8x288xf32>
    %12 = arith.addf %6, %11 : vector<8x288xf32>
    %c0_14 = arith.constant 0 : index
    %c0_15 = arith.constant 0 : index
    %c0_16 = arith.constant 0 : index
    %c2 = arith.constant 2 : index
    %13 = vector.load %arg2[%c0_14, %c0_15, %c0_16, %c2] : memref<1x1x4x326xf32, #tpu.memory_space<vmem>>, vector<1x1x4x288xf32>
    %14 = vector.shape_cast %13 : vector<1x1x4x288xf32> to vector<4x288xf32>
    %c2_17 = arith.constant 2 : index
    %c0_18 = arith.constant 0 : index
    %c0_19 = arith.constant 0 : index
    %15 = vector.load %arg3[%c2_17, %c0_18, %c0_19] : memref<9x8x4xf32, #tpu.memory_space<vmem>>, vector<1x8x4xf32>
    %16 = vector.shape_cast %15 : vector<1x8x4xf32> to vector<8x4xf32>
    %cst_20 = arith.constant dense<0.000000e+00> : vector<8x288xf32>
    %17 = tpu.matmul %16, %14, %cst_20 {dimension_numbers = #tpu.dot_dimension_numbers<[1], [0], [0], [1], [0, 0, 1, 1], [], []>} : vector<8x4xf32>, vector<4x288xf32>, vector<8x288xf32> -> vector<8x288xf32>
    %18 = arith.addf %12, %17 : vector<8x288xf32>
    %c0_21 = arith.constant 0 : index
    %c0_22 = arith.constant 0 : index
    %c0_23 = arith.constant 0 : index
    %c18 = arith.constant 18 : index
    %19 = vector.load %arg2[%c0_21, %c0_22, %c0_23, %c18] : memref<1x1x4x326xf32, #tpu.memory_space<vmem>>, vector<1x1x4x288xf32>
    %20 = vector.shape_cast %19 : vector<1x1x4x288xf32> to vector<4x288xf32>
    %c3 = arith.constant 3 : index
    %c0_24 = arith.constant 0 : index
    %c0_25 = arith.constant 0 : index
    %21 = vector.load %arg3[%c3, %c0_24, %c0_25] : memref<9x8x4xf32, #tpu.memory_space<vmem>>, vector<1x8x4xf32>
    %22 = vector.shape_cast %21 : vector<1x8x4xf32> to vector<8x4xf32>
    %cst_26 = arith.constant dense<0.000000e+00> : vector<8x288xf32>
    %23 = tpu.matmul %22, %20, %cst_26 {dimension_numbers = #tpu.dot_dimension_numbers<[1], [0], [0], [1], [0, 0, 1, 1], [], []>} : vector<8x4xf32>, vector<4x288xf32>, vector<8x288xf32> -> vector<8x288xf32>
    %24 = arith.addf %18, %23 : vector<8x288xf32>
    %c0_27 = arith.constant 0 : index
    %c0_28 = arith.constant 0 : index
    %c0_29 = arith.constant 0 : index
    %c19 = arith.constant 19 : index
    %25 = vector.load %arg2[%c0_27, %c0_28, %c0_29, %c19] : memref<1x1x4x326xf32, #tpu.memory_space<vmem>>, vector<1x1x4x288xf32>
    %26 = vector.shape_cast %25 : vector<1x1x4x288xf32> to vector<4x288xf32>
    %c4 = arith.constant 4 : index
    %c0_30 = arith.constant 0 : index
    %c0_31 = arith.constant 0 : index
    %27 = vector.load %arg3[%c4, %c0_30, %c0_31] : memref<9x8x4xf32, #tpu.memory_space<vmem>>, vector<1x8x4xf32>
    %28 = vector.shape_cast %27 : vector<1x8x4xf32> to vector<8x4xf32>
    %cst_32 = arith.constant dense<0.000000e+00> : vector<8x288xf32>
    %29 = tpu.matmul %28, %26, %cst_32 {dimension_numbers = #tpu.dot_dimension_numbers<[1], [0], [0], [1], [0, 0, 1, 1], [], []>} : vector<8x4xf32>, vector<4x288xf32>, vector<8x288xf32> -> vector<8x288xf32>
    %30 = arith.addf %24, %29 : vector<8x288xf32>
    %c0_33 = arith.constant 0 : index
    %c0_34 = arith.constant 0 : index
    %c0_35 = arith.constant 0 : index
    %c20 = arith.constant 20 : index
    %31 = vector.load %arg2[%c0_33, %c0_34, %c0_35, %c20] : memref<1x1x4x326xf32, #tpu.memory_space<vmem>>, vector<1x1x4x288xf32>
    %32 = vector.shape_cast %31 : vector<1x1x4x288xf32> to vector<4x288xf32>
    %c5 = arith.constant 5 : index
    %c0_36 = arith.constant 0 : index
    %c0_37 = arith.constant 0 : index
    %33 = vector.load %arg3[%c5, %c0_36, %c0_37] : memref<9x8x4xf32, #tpu.memory_space<vmem>>, vector<1x8x4xf32>
    %34 = vector.shape_cast %33 : vector<1x8x4xf32> to vector<8x4xf32>
    %cst_38 = arith.constant dense<0.000000e+00> : vector<8x288xf32>
    %35 = tpu.matmul %34, %32, %cst_38 {dimension_numbers = #tpu.dot_dimension_numbers<[1], [0], [0], [1], [0, 0, 1, 1], [], []>} : vector<8x4xf32>, vector<4x288xf32>, vector<8x288xf32> -> vector<8x288xf32>
    %36 = arith.addf %30, %35 : vector<8x288xf32>
    %c0_39 = arith.constant 0 : index
    %c0_40 = arith.constant 0 : index
    %c0_41 = arith.constant 0 : index
    %c36 = arith.constant 36 : index
    %37 = vector.load %arg2[%c0_39, %c0_40, %c0_41, %c36] : memref<1x1x4x326xf32, #tpu.memory_space<vmem>>, vector<1x1x4x288xf32>
    %38 = vector.shape_cast %37 : vector<1x1x4x288xf32> to vector<4x288xf32>
    %c6 = arith.constant 6 : index
    %c0_42 = arith.constant 0 : index
    %c0_43 = arith.constant 0 : index
    %39 = vector.load %arg3[%c6, %c0_42, %c0_43] : memref<9x8x4xf32, #tpu.memory_space<vmem>>, vector<1x8x4xf32>
    %40 = vector.shape_cast %39 : vector<1x8x4xf32> to vector<8x4xf32>
    %cst_44 = arith.constant dense<0.000000e+00> : vector<8x288xf32>
    %41 = tpu.matmul %40, %38, %cst_44 {dimension_numbers = #tpu.dot_dimension_numbers<[1], [0], [0], [1], [0, 0, 1, 1], [], []>} : vector<8x4xf32>, vector<4x288xf32>, vector<8x288xf32> -> vector<8x288xf32>
    %42 = arith.addf %36, %41 : vector<8x288xf32>
    %c0_45 = arith.constant 0 : index
    %c0_46 = arith.constant 0 : index
    %c0_47 = arith.constant 0 : index
    %c37 = arith.constant 37 : index
    %43 = vector.load %arg2[%c0_45, %c0_46, %c0_47, %c37] : memref<1x1x4x326xf32, #tpu.memory_space<vmem>>, vector<1x1x4x288xf32>
    %44 = vector.shape_cast %43 : vector<1x1x4x288xf32> to vector<4x288xf32>
    %c7 = arith.constant 7 : index
    %c0_48 = arith.constant 0 : index
    %c0_49 = arith.constant 0 : index
    %45 = vector.load %arg3[%c7, %c0_48, %c0_49] : memref<9x8x4xf32, #tpu.memory_space<vmem>>, vector<1x8x4xf32>
    %46 = vector.shape_cast %45 : vector<1x8x4xf32> to vector<8x4xf32>
    %cst_50 = arith.constant dense<0.000000e+00> : vector<8x288xf32>
    %47 = tpu.matmul %46, %44, %cst_50 {dimension_numbers = #tpu.dot_dimension_numbers<[1], [0], [0], [1], [0, 0, 1, 1], [], []>} : vector<8x4xf32>, vector<4x288xf32>, vector<8x288xf32> -> vector<8x288xf32>
    %48 = arith.addf %42, %47 : vector<8x288xf32>
    %c0_51 = arith.constant 0 : index
    %c0_52 = arith.constant 0 : index
    %c0_53 = arith.constant 0 : index
    %c38 = arith.constant 38 : index
    %49 = vector.load %arg2[%c0_51, %c0_52, %c0_53, %c38] : memref<1x1x4x326xf32, #tpu.memory_space<vmem>>, vector<1x1x4x288xf32>
    %50 = vector.shape_cast %49 : vector<1x1x4x288xf32> to vector<4x288xf32>
    %c8 = arith.constant 8 : index
    %c0_54 = arith.constant 0 : index
    %c0_55 = arith.constant 0 : index
    %51 = vector.load %arg3[%c8, %c0_54, %c0_55] : memref<9x8x4xf32, #tpu.memory_space<vmem>>, vector<1x8x4xf32>
    %52 = vector.shape_cast %51 : vector<1x8x4xf32> to vector<8x4xf32>
    %cst_56 = arith.constant dense<0.000000e+00> : vector<8x288xf32>
    %53 = tpu.matmul %52, %50, %cst_56 {dimension_numbers = #tpu.dot_dimension_numbers<[1], [0], [0], [1], [0, 0, 1, 1], [], []>} : vector<8x4xf32>, vector<4x288xf32>, vector<8x288xf32> -> vector<8x288xf32>
    %54 = arith.addf %48, %53 : vector<8x288xf32>
    %c0_57 = arith.constant 0 : index
    %c0_58 = arith.constant 0 : index
    %55 = vector.load %arg4[%c0_57, %c0_58] : memref<8x1xf32, #tpu.memory_space<vmem>>, vector<8x1xf32>
    %56 = vector.broadcast %55 : vector<8x1xf32> to vector<8x288xf32>
    %57 = arith.addf %54, %56 : vector<8x288xf32>
    %c0_59 = arith.constant 0 : index
    %c0_60 = arith.constant 0 : index
    %c0_61 = arith.constant 0 : index
    %58 = vector.load %arg5[%c0_59, %c0_60, %c0_61] : memref<1x8x288xf32, #tpu.memory_space<vmem>>, vector<1x8x288xf32>
    %59 = vector.shape_cast %58 : vector<1x8x288xf32> to vector<8x288xf32>
    %60 = vector.shape_cast %57 : vector<8x288xf32> to vector<1x8x288xf32>
    tpu.vector_store %arg5[%c0_59, %c0_60, %c0_61], %60 {strides = array<i32>} : memref<1x8x288xf32, #tpu.memory_space<vmem>>, vector<1x8x288xf32>,
    return
  }
  func.func @transform_0(%arg0: i32, %arg1: i32) -> (i32, i32, i32, i32) {
    %c0_i32 = arith.constant 0 : i32
    %c0_i32_0 = arith.constant 0 : i32
    %c0_i32_1 = arith.constant 0 : i32
    return %arg0, %arg1, %c0_i32, %c0_i32_0 : i32, i32, i32, i32
  }
  func.func @transform_1(%arg0: i32, %arg1: i32) -> (i32, i32, i32) {
    %c0_i32 = arith.constant 0 : i32
    %c0_i32_0 = arith.constant 0 : i32
    %c0_i32_1 = arith.constant 0 : i32
    %c0_i32_2 = arith.constant 0 : i32
    return %c0_i32, %c0_i32_0, %c0_i32_1 : i32, i32, i32
  }
  func.func @transform_2(%arg0: i32, %arg1: i32) -> (i32, i32) {
    %c0_i32 = arith.constant 0 : i32
    %c0_i32_0 = arith.constant 0 : i32
    %c0_i32_1 = arith.constant 0 : i32
    return %c0_i32, %c0_i32_0 : i32, i32
  }
  func.func @transform_3(%arg0: i32, %arg1: i32) -> (i32, i32, i32) {
    %c0_i32 = arith.constant 0 : i32
    %c0_i32_0 = arith.constant 0 : i32
    return %arg0, %c0_i32, %arg1 : i32, i32, i32
  }
}

</mosaic_0001>

<llo_original>
// kernel: tpu_custom_call.1
$region0: #{tpu_custom_call.1}
  #allocation0 [shape = 'u32[]', space=smem, size = 0x4, offset = 0x4, fixed_abs, tag = 'smem constant byte address 0x4 - core index']
  #allocation1 [shape = 'u32[144,128]{1,0:T(1,128)}', space=vmem, size = 0x12000, scoped, tag = 'internal scratch']
  %s0 = inlined_call_operand.vmem [shape: f32[2,1,4,326], index: 0, kind: input, shape index: {}]
  %s1 = inlined_call_operand.vmem [shape: f32[9,8,4], index: 1, kind: input, shape index: {}]
  %s2 = inlined_call_operand.vmem [shape: f32[8,1], index: 2, kind: input, shape index: {}]
  %s3 = inlined_call_operand.hbm [shape: f32[2,8,288], index: 3, kind: output, shape index: {}]
  %s4 = sld [smem:[#allocation0]]
  $region45: #{tpu_custom_call.1} parent=0
    _
  %s6 = ssub.s32 1, %s4
  %s7 = scalar_select 0, %s6, %s4
  $region1: #{tpu_custom_call.1} parent=0
    #allocation2 [shape = 'u8[24576]{0}', space=vmem, size = 0x6000, scoped, tag = 'output window, operand 0']
    #allocation3 [shape = 's32[2]{0}', space=sflag, size = 0x8, scoped, tag = 'scoped memory for tpu_custom_call.1']
    %8 = vsyncpa [#allocation3], 0
    %s9 = scalar_lea.sflag [#allocation3], 1
    %10 = vsyncpa %s9, 0
    loop: start=0, step=1, limit=4
    $region2: #{tpu_custom_call.1} parent=1 // loop_pre_header
      _
    $region3: #{tpu_custom_call.1} parent=1 // loop_header
      %s12 = sphi 0, %s16
      %p13 = scmp.ge.s32.totalorder %s12, 4
      %s19 = sphi 0, %s31
      %s20 = sphi 0, %s27
      %s21 = sphi 0, %s19
      %s22 = sphi 0, %s20
      %s23 = sphi 0, %s21
      %s24 = sphi 0, %s22
      %s36 = sphi 0, %s38
      %s39 = sphi 0, %s36
      %s40 = sphi 0, %s39
      %s56 = sphi 0, %s40
      %s60 = sphi 0, %s60
      %s62 = sphi 0, %s60
      %s63 = sphi 0, %s62
      %s77 = sphi 0, %s63
      %s81 = sphi 0, %s81
      %s83 = sphi 0, %s81
      %s84 = sphi 0, %s83
      %s98 = sphi 0, %s84
      %s106 = sphi 0, %s108
      %s109 = sphi 0, %s106
      %s110 = sphi 0, %s109
      %s126 = sphi 0, %s110
    $region4: #{tpu_custom_call.1} parent=1 // loop_header_branch
      %15 = sbr.rel (%p13) target = $region8
    $region5: #{tpu_custom_call.1} parent=1 // loop_body
      %s17 = ssub.s32 %s12, 1
      %s18 = ssub.s32 %s12, 2
      %s25 = sadd.s32 1, %s20
      %p26 = scmp.ge.s32.totalorder %s25, 1
      %s27 = scalar_select %p26, 0, %s25
      %s28 = sadd.s32 1, %s19
      %s29 = scalar_select %p26, %s28, %s19
      %p30 = scmp.ge.s32.totalorder %s29, 2
      %s31 = scalar_select %p30, 0, %s29
      %s32 = ssub.s32 %s19, %s31
      %s33 = ssub.s32 %s20, %s27
      %s34 = sor.u32 %s32, %s33
      %p35 = scmp.eq.s32.totalorder %s34, 0
      %s37 = sadd.s32 %s36, 1
      %s38 = scalar_select %p35, %s36, %s37
      %p41 = pneg %p35
      %p42 = scmp.eq.s32.totalorder %s12, 1
      %p43 = por %p41, %p42
      %p44 = scmp.ne.s32.totalorder %s36, %s39
      %p45 = scmp.eq.s32.totalorder %s12, 0
      %p46 = por %p44, %p45
      %p47 = scmp.ne.s32.totalorder %s36, %s39
      %p48 = scmp.eq.s32.totalorder %s17, 1
      %p49 = por %p47, %p48
      %p50 = scmp.ne.s32.totalorder %s39, %s40
      %p51 = scmp.eq.s32.totalorder %s17, 0
      %p52 = por %p50, %p51
      %p53 = scmp.ne.s32.totalorder %s39, %s40
      %p54 = scmp.eq.s32.totalorder %s18, 1
      %p55 = por %p53, %p54
      %p57 = scmp.ne.s32.totalorder %s40, %s56
      %p58 = scmp.eq.s32.totalorder %s18, 0
      %p59 = por %p57, %p58
      %s61 = sadd.s32 %s60, 1
      %p64 = scmp.eq.s32.totalorder %s12, 1
      %p65 = scmp.ne.s32.totalorder %s60, %s62
      %p66 = scmp.eq.s32.totalorder %s12, 0
      %p67 = por %p65, %p66
      %p68 = scmp.ne.s32.totalorder %s60, %s62
      %p69 = scmp.eq.s32.totalorder %s17, 1
      %p70 = por %p68, %p69
      %p71 = scmp.ne.s32.totalorder %s62, %s63
      %p72 = scmp.eq.s32.totalorder %s17, 0
      %p73 = por %p71, %p72
      %p74 = scmp.ne.s32.totalorder %s62, %s63
      %p75 = scmp.eq.s32.totalorder %s18, 1
      %p76 = por %p74, %p75
      %p78 = scmp.ne.s32.totalorder %s63, %s77
      %p79 = scmp.eq.s32.totalorder %s18, 0
      %p80 = por %p78, %p79
      %s82 = sadd.s32 %s81, 1
      %p85 = scmp.eq.s32.totalorder %s12, 1
      %p86 = scmp.ne.s32.totalorder %s81, %s83
      %p87 = scmp.eq.s32.totalorder %s12, 0
      %p88 = por %p86, %p87
      %p89 = scmp.ne.s32.totalorder %s81, %s83
      %p90 = scmp.eq.s32.totalorder %s17, 1
      %p91 = por %p89, %p90
      %p92 = scmp.ne.s32.totalorder %s83, %s84
      %p93 = scmp.eq.s32.totalorder %s17, 0
      %p94 = por %p92, %p93
      %p95 = scmp.ne.s32.totalorder %s83, %s84
      %p96 = scmp.eq.s32.totalorder %s18, 1
      %p97 = por %p95, %p96
      %p99 = scmp.ne.s32.totalorder %s84, %s98
      %p100 = scmp.eq.s32.totalorder %s18, 0
      %p101 = por %p99, %p100
      %s102 = ssub.s32 %s19, %s31
      %s103 = ssub.s32 %s20, %s27
      %s104 = sor.u32 %s102, %s103
      %p105 = scmp.eq.s32.totalorder %s104, 0
      %s107 = sadd.s32 %s106, 1
      %s108 = scalar_select %p105, %s106, %s107
      %p111 = pneg %p105
      %p112 = scmp.eq.s32.totalorder %s12, 1
      %p113 = por %p111, %p112
      %p114 = scmp.ne.s32.totalorder %s106, %s109
      %p115 = scmp.eq.s32.totalorder %s12, 0
      %p116 = por %p114, %p115
      %p117 = scmp.ne.s32.totalorder %s106, %s109
      %p118 = scmp.eq.s32.totalorder %s17, 1
      %p119 = por %p117, %p118
      %p120 = scmp.ne.s32.totalorder %s109, %s110
      %p121 = scmp.eq.s32.totalorder %s17, 0
      %p122 = por %p120, %p121
      %p123 = scmp.ne.s32.totalorder %s109, %s110
      %p124 = scmp.eq.s32.totalorder %s18, 1
      %p125 = por %p123, %p124
      %p127 = scmp.ne.s32.totalorder %s110, %s126
      %p128 = scmp.eq.s32.totalorder %s18, 0
      %p129 = por %p127, %p128
      %p130 = scmp.le.s32.totalorder 1, %s12
      %p131 = scmp.lt.s32.totalorder %s12, 3
      %p132 = pnand %p130, %p131
      %p133 = pneg %p132
      // Predicated region
      $region9: #{tpu_custom_call.1} parent=5 // pred_check
        _
      $region10: #{tpu_custom_call.1} parent=5 // pred_check_branch
        %135 = sbr.rel (%p132) target = $region12
      $region11: #{tpu_custom_call.1} parent=5 // pred_region
        %s136 = ssub.s32 %s12, 1
        // Predicated region
        $region13: #{tpu_custom_call.1} parent=11 // pred_check
          %p137 = pneg %p73
        $region14: #{tpu_custom_call.1} parent=11 // pred_check_branch
          %139 = sbr.rel (%p137) target = $region16
        $region15: #{tpu_custom_call.1} parent=11 // pred_region
          _
        $region16: #{tpu_custom_call.1} parent=11 // pred_fallthru
          _
        // Predicated region
        $region17: #{tpu_custom_call.1} parent=11 // pred_check
          %p140 = pneg %p94
        $region18: #{tpu_custom_call.1} parent=11 // pred_check_branch
          %142 = sbr.rel (%p140) target = $region20
        $region19: #{tpu_custom_call.1} parent=11 // pred_region
          _
        $region20: #{tpu_custom_call.1} parent=11 // pred_fallthru
          _
      $region12: #{tpu_custom_call.1} parent=5 // pred_fallthru
        _
      %p143 = scmp.lt.s32.totalorder %s12, 2
      // Predicated region
      $region21: #{tpu_custom_call.1} parent=5 // pred_check
        %p144 = pneg %p143
      $region22: #{tpu_custom_call.1} parent=5 // pred_check_branch
        %146 = sbr.rel (%p144) target = $region24
      $region23: #{tpu_custom_call.1} parent=5 // pred_region
        // Predicated region
        $region25: #{tpu_custom_call.1} parent=23 // pred_check
          %p147 = pneg %p46
        $region26: #{tpu_custom_call.1} parent=23 // pred_check_branch
          %149 = sbr.rel (%p147) target = $region28
        $region27: #{tpu_custom_call.1} parent=23 // pred_region
          %p150 = scmp.lt.s32.totalorder %s19, 1
          %s151 = scalar_select %p150, %s19, 1
          %p152 = scmp.lt.s32.totalorder %s20, 0
          %s153 = scalar_select %p152, %s20, 0
          %s154 = smul.addr %s153, 3
          %s155 = smul.addr %s151, 3
          %s156 = sadd.s32 %s154, %s155
          %s157 = smul.addr %s156, 4
          %s158 = scalar_lea.vmem %s0, %s157
        $region28: #{tpu_custom_call.1} parent=23 // pred_fallthru
          _
      $region24: #{tpu_custom_call.1} parent=5 // pred_fallthru
        _
      %p159 = scmp.le.s32.totalorder 1, %s12
      %p160 = scmp.lt.s32.totalorder %s12, 3
      %p161 = pnand %p159, %p160
      %p162 = pneg %p161
      // Predicated region
      $region29: #{tpu_custom_call.1} parent=5 // pred_check
        _
      $region30: #{tpu_custom_call.1} parent=5 // pred_check_branch
        %164 = sbr.rel (%p161) target = $region32
      $region31: #{tpu_custom_call.1} parent=5 // pred_region
        %s165 = ssub.s32 %s12, 1
        %p166 = scmp.lt.s32.totalorder %s21, 1
        %s167 = scalar_select %p166, %s21, 1
        %p168 = scmp.lt.s32.totalorder %s22, 0
        %s169 = scalar_select %p168, %s22, 0
        %s170 = smul.addr %s169, 3
        %s171 = smul.addr %s167, 3
        %s172 = sadd.s32 %s170, %s171
        %s173 = smul.addr %s172, 4
        %s174 = scalar_lea.vmem %s0, %s173
        %p175 = pneg %p52
        %p176 = pneg %p49
        %p177 = pneg %p73
        %p178 = pneg %p70
        %p179 = pneg %p94
        %p180 = pneg %p91
        %p181 = pneg %p122
        %p182 = pneg %p119
        %s183 = sand.u32 %s109, 1
        %s184 = scalar_lea.sflag [#allocation3], %s183
        %s185 = sand.u32 %s109, 1
        %s186 = smul.addr %s185, 24
        %s187 = scalar_lea.vmem [#allocation2], %s186
        %p188 = scmp.lt.s32.totalorder %s21, 1
        %s189 = scalar_select %p188, %s21, 1
        %p190 = scmp.lt.s32.totalorder %s22, 0
        %s191 = scalar_select %p190, %s22, 0
        %s192 = smul.addr %s191, 3
        %s193 = smul.addr %s189, 3
        %s194 = sadd.s32 %s192, %s193
        %s195 = smul.addr %s194, 4
        %s196 = scalar_lea.vmem %s0, %s195
        %s197 = smul.u32 3, %s22
        %v198 = vld [vmem:[%s196] sm:$0xff]
        %v199 = vld [vmem:[%s196 + $0x8] sm:$0xf]
        %v200 = vld [vmem:[%s1] sm:$0xff]
        %s201 = scalar_lea.vmem %s1, 8
        %v202 = vld [vmem:[%s201] sm:$0xff]
        %v205 = vcombine.high %v198, %v198
        %206 = vrot.lane.b32.xlu0 %v198, 127
        %v207 = vpop.permute.xlu0 %206
        %208 = vrot.lane.b32.xlu0 %v205, 127
        %v209 = vpop.permute.xlu0 %208
        %210 = vrot.lane.b32.xlu0 %v199, 127
        %v211 = vpop.permute.xlu0 %210
        %vm212 = vcmask 1039360
        %v213 = vsel %vm212, %v207, %v209
        %v214 = vsel %vm212, %v209, %v211
        %vm215 = vcmask 31744
        %v217 = vsel %vm215, %v202, 0
        %vm219 = vcmask 1043456
        %v220 = vsel %vm219, %v213, 0
        %v222 = vsel %vm219, %v214, 0
        %v224 = vsel %vm219, %v211, 0
        %226 = vmatprep.subr.mxu0 %v222
        %227 = vmatpush1.msra.mxu0 %v220
        %228 = vmatprep.subr.mxu0 0.0
        %229 = vmatpush1.msra.mxu0 0.0
        %230 = vmatprep.subr.mxu0 0.0
        %231 = vmatpush1.msra.mxu0 0.0
        %232 = vmatprep.subr.mxu0 0.0
        %233 = vmatpush1.msra.mxu0 0.0
        %234 = vmatprep.subr.mxu0 0.0
        %235 = vmatpush1.msra.mxu0 0.0
        %236 = vmatprep.subr.mxu0 0.0
        %237 = vmatpush1.msra.mxu0 0.0
        %238 = vmatprep.subr.mxu0 0.0
        %239 = vmatpush1.msra.mxu0 0.0
        %240 = vmatprep.subr.mxu0 0.0
        %241 = vmatpush1.msra.mxu0 0.0
        %242 = vmatprep.subr.mxu0 0.0
        %243 = vmatpush1.msra.mxu0 0.0
        %244 = vmatprep.subr.mxu0 0.0
        %245 = vmatpush1.msra.mxu0 0.0
        %246 = vmatprep.subr.mxu0 0.0
        %247 = vmatpush1.msra.mxu0 0.0
        %248 = vmatprep.subr.mxu0 0.0
        %249 = vmatpush1.msra.mxu0 0.0
        %250 = vmatprep.subr.mxu0 0.0
        %251 = vmatpush1.msra.mxu0 0.0
        %252 = vmatprep.subr.mxu0 0.0
        %253 = vmatpush1.msra.mxu0 0.0
        %254 = vmatprep.subr.mxu0 0.0
        %255 = vmatpush1.msra.mxu0 0.0
        %256 = vmatprep.subr.mxu0 0.0
        %257 = vmatpush1.msra.mxu0 0.0
        %258 = vmatprep.subr.mxu0 0.0
        %259 = vmatpush1.msra.mxu0 0.0
        %260 = vmatprep.subr.mxu0 0.0
        %261 = vmatpush1.msra.mxu0 0.0
        %262 = vmatprep.subr.mxu0 0.0
        %263 = vmatpush1.msra.mxu0 0.0
        %264 = vmatprep.subr.mxu0 0.0
        %265 = vmatpush1.msra.mxu0 0.0
        %266 = vmatprep.subr.mxu0 0.0
        %267 = vmatpush1.msra.mxu0 0.0
        %268 = vmatprep.subr.mxu0 0.0
        %269 = vmatpush1.msra.mxu0 0.0
        %270 = vmatprep.subr.mxu0 0.0
        %271 = vmatpush1.msra.mxu0 0.0
        %272 = vmatprep.subr.mxu0 0.0
        %273 = vmatpush1.msra.mxu0 0.0
        %274 = vmatprep.subr.mxu0 0.0
        %275 = vmatpush1.msra.mxu0 0.0
        %276 = vmatprep.subr.mxu0 0.0
        %277 = vmatpush1.msra.mxu0 0.0
        %278 = vmatprep.subr.mxu0 0.0
        %279 = vmatpush1.msra.mxu0 0.0
        %280 = vmatprep.subr.mxu0 0.0
        %281 = vmatpush1.msra.mxu0 0.0
        %282 = vmatprep.subr.mxu0 0.0
        %283 = vmatpush1.msra.mxu0 0.0
        %284 = vmatprep.subr.mxu0 0.0
        %285 = vmatpush1.msra.mxu0 0.0
        %286 = vmatprep.subr.mxu0 0.0
        %287 = vmatpush1.msra.mxu0 0.0
        %288 = vmatprep.subr.mxu0 0.0
        %289 = vmatpush1.msra.mxu0 0.0
        %290 = vmatprep.mubr.f32.mxu0 0.0
        %291 = vmatmul.mubr.f32.gmra.mrb[0].mxu0 %v217
        %v292 = vpop.f32.mrb[0].mxu0
        %v293 = vadd.f32 0.0, %v292
        %v294 = vpop.f32.mrb[0].mxu0
        %v295 = vadd.f32 0.0, %v294
        %296 = vdwg.mxu0
        %297 = vmatprep.subr.mxu0 0.0
        %298 = vmatpush1.msra.mxu0 %v224
        %299 = vmatprep.subr.mxu0 0.0
        %300 = vmatpush1.msra.mxu0 0.0
        %301 = vmatprep.subr.mxu0 0.0
        %302 = vmatpush1.msra.mxu0 0.0
        %303 = vmatprep.subr.mxu0 0.0
        %304 = vmatpush1.msra.mxu0 0.0
        %305 = vmatprep.subr.mxu0 0.0
        %306 = vmatpush1.msra.mxu0 0.0
        %307 = vmatprep.subr.mxu0 0.0
        %308 = vmatpush1.msra.mxu0 0.0
        %309 = vmatprep.subr.mxu0 0.0
        %310 = vmatpush1.msra.mxu0 0.0
        %311 = vmatprep.subr.mxu0 0.0
        %312 = vmatpush1.msra.mxu0 0.0
        %313 = vmatprep.subr.mxu0 0.0
        %314 = vmatpush1.msra.mxu0 0.0
        %315 = vmatprep.subr.mxu0 0.0
        %316 = vmatpush1.msra.mxu0 0.0
        %317 = vmatprep.subr.mxu0 0.0
        %318 = vmatpush1.msra.mxu0 0.0
        %319 = vmatprep.subr.mxu0 0.0
        %320 = vmatpush1.msra.mxu0 0.0
        %321 = vmatprep.subr.mxu0 0.0
        %322 = vmatpush1.msra.mxu0 0.0
        %323 = vmatprep.subr.mxu0 0.0
        %324 = vmatpush1.msra.mxu0 0.0
        %325 = vmatprep.subr.mxu0 0.0
        %326 = vmatpush1.msra.mxu0 0.0
        %327 = vmatprep.subr.mxu0 0.0
        %328 = vmatpush1.msra.mxu0 0.0
        %329 = vmatprep.subr.mxu0 0.0
        %330 = vmatpush1.msra.mxu0 0.0
        %331 = vmatprep.subr.mxu0 0.0
        %332 = vmatpush1.msra.mxu0 0.0
        %333 = vmatprep.subr.mxu0 0.0
        %334 = vmatpush1.msra.mxu0 0.0
        %335 = vmatprep.subr.mxu0 0.0
        %336 = vmatpush1.msra.mxu0 0.0
        %337 = vmatprep.subr.mxu0 0.0
        %338 = vmatpush1.msra.mxu0 0.0
        %339 = vmatprep.subr.mxu0 0.0
        %340 = vmatpush1.msra.mxu0 0.0
        %341 = vmatprep.subr.mxu0 0.0
        %342 = vmatpush1.msra.mxu0 0.0
        %343 = vmatprep.subr.mxu0 0.0
        %344 = vmatpush1.msra.mxu0 0.0
        %345 = vmatprep.subr.mxu0 0.0
        %346 = vmatpush1.msra.mxu0 0.0
        %347 = vmatprep.subr.mxu0 0.0
        %348 = vmatpush1.msra.mxu0 0.0
        %349 = vmatprep.subr.mxu0 0.0
        %350 = vmatpush1.msra.mxu0 0.0
        %351 = vmatprep.subr.mxu0 0.0
        %352 = vmatpush1.msra.mxu0 0.0
        %353 = vmatprep.subr.mxu0 0.0
        %354 = vmatpush1.msra.mxu0 0.0
        %355 = vmatprep.subr.mxu0 0.0
        %356 = vmatpush1.msra.mxu0 0.0
        %357 = vmatprep.subr.mxu0 0.0
        %358 = vmatpush1.msra.mxu0 0.0
        %359 = vmatprep.subr.mxu0 0.0
        %360 = vmatpush1.msra.mxu0 0.0
        %361 = vmatprep.mubr.f32.mxu0 0.0
        %362 = vmatmul.mubr.f32.gmra.mrb[0].mxu0 %v217
        %v363 = vpop.f32.mrb[0].mxu0
        %v364 = vadd.f32 0.0, %v363
        %v365 = vpop.f32.mrb[0].mxu0
        %366 = vdwg.mxu0
        %v368 = vsel %vm215, %v200, 0
        %v370 = vsel %vm219, %v198, 0
        %v372 = vsel %vm219, %v205, 0
        %v374 = vsel %vm219, %v199, 0
        %376 = vmatprep.subr.mxu0 %v372
        %377 = vmatpush1.msra.mxu0 %v370
        %378 = vmatprep.subr.mxu0 0.0
        %379 = vmatpush1.msra.mxu0 0.0
        %380 = vmatprep.subr.mxu0 0.0
        %381 = vmatpush1.msra.mxu0 0.0
        %382 = vmatprep.subr.mxu0 0.0
        %383 = vmatpush1.msra.mxu0 0.0
        %384 = vmatprep.subr.mxu0 0.0
        %385 = vmatpush1.msra.mxu0 0.0
        %386 = vmatprep.subr.mxu0 0.0
        %387 = vmatpush1.msra.mxu0 0.0
        %388 = vmatprep.subr.mxu0 0.0
        %389 = vmatpush1.msra.mxu0 0.0
        %390 = vmatprep.subr.mxu0 0.0
        %391 = vmatpush1.msra.mxu0 0.0
        %392 = vmatprep.subr.mxu0 0.0
        %393 = vmatpush1.msra.mxu0 0.0
        %394 = vmatprep.subr.mxu0 0.0
        %395 = vmatpush1.msra.mxu0 0.0
        %396 = vmatprep.subr.mxu0 0.0
        %397 = vmatpush1.msra.mxu0 0.0
        %398 = vmatprep.subr.mxu0 0.0
        %399 = vmatpush1.msra.mxu0 0.0
        %400 = vmatprep.subr.mxu0 0.0
        %401 = vmatpush1.msra.mxu0 0.0
        %402 = vmatprep.subr.mxu0 0.0
        %403 = vmatpush1.msra.mxu0 0.0
        %404 = vmatprep.subr.mxu0 0.0
        %405 = vmatpush1.msra.mxu0 0.0
        %406 = vmatprep.subr.mxu0 0.0
        %407 = vmatpush1.msra.mxu0 0.0
        %408 = vmatprep.subr.mxu0 0.0
        %409 = vmatpush1.msra.mxu0 0.0
        %410 = vmatprep.subr.mxu0 0.0
        %411 = vmatpush1.msra.mxu0 0.0
        %412 = vmatprep.subr.mxu0 0.0
        %413 = vmatpush1.msra.mxu0 0.0
        %414 = vmatprep.subr.mxu0 0.0
        %415 = vmatpush1.msra.mxu0 0.0
        %416 = vmatprep.subr.mxu0 0.0
        %417 = vmatpush1.msra.mxu0 0.0
        %418 = vmatprep.subr.mxu0 0.0
        %419 = vmatpush1.msra.mxu0 0.0
        %420 = vmatprep.subr.mxu0 0.0
        %421 = vmatpush1.msra.mxu0 0.0
        %422 = vmatprep.subr.mxu0 0.0
        %423 = vmatpush1.msra.mxu0 0.0
        %424 = vmatprep.subr.mxu0 0.0
        %425 = vmatpush1.msra.mxu0 0.0
        %426 = vmatprep.subr.mxu0 0.0
        %427 = vmatpush1.msra.mxu0 0.0
        %428 = vmatprep.subr.mxu0 0.0
        %429 = vmatpush1.msra.mxu0 0.0
        %430 = vmatprep.subr.mxu0 0.0
        %431 = vmatpush1.msra.mxu0 0.0
        %432 = vmatprep.subr.mxu0 0.0
        %433 = vmatpush1.msra.mxu0 0.0
        %434 = vmatprep.subr.mxu0 0.0
        %435 = vmatpush1.msra.mxu0 0.0
        %436 = vmatprep.subr.mxu0 0.0
        %437 = vmatpush1.msra.mxu0 0.0
        %438 = vmatprep.subr.mxu0 0.0
        %439 = vmatpush1.msra.mxu0 0.0
        %440 = vmatprep.mubr.f32.mxu0 0.0
        %441 = vmatmul.mubr.f32.gmra.mrb[0].mxu0 %v368
        %v442 = vpop.f32.mrb[0].mxu0
        %v443 = vadd.f32 %v293, %v442
        %v444 = vpop.f32.mrb[0].mxu0
        %v445 = vadd.f32 %v295, %v444
        %446 = vdwg.mxu0
        %447 = vmatprep.subr.mxu0 0.0
        %448 = vmatpush1.msra.mxu0 %v374
        %449 = vmatprep.subr.mxu0 0.0
        %450 = vmatpush1.msra.mxu0 0.0
        %451 = vmatprep.subr.mxu0 0.0
        %452 = vmatpush1.msra.mxu0 0.0
        %453 = vmatprep.subr.mxu0 0.0
        %454 = vmatpush1.msra.mxu0 0.0
        %455 = vmatprep.subr.mxu0 0.0
        %456 = vmatpush1.msra.mxu0 0.0
        %457 = vmatprep.subr.mxu0 0.0
        %458 = vmatpush1.msra.mxu0 0.0
        %459 = vmatprep.subr.mxu0 0.0
        %460 = vmatpush1.msra.mxu0 0.0
        %461 = vmatprep.subr.mxu0 0.0
        %462 = vmatpush1.msra.mxu0 0.0
        %463 = vmatprep.subr.mxu0 0.0
        %464 = vmatpush1.msra.mxu0 0.0
        %465 = vmatprep.subr.mxu0 0.0
        %466 = vmatpush1.msra.mxu0 0.0
        %467 = vmatprep.subr.mxu0 0.0
        %468 = vmatpush1.msra.mxu0 0.0
        %469 = vmatprep.subr.mxu0 0.0
        %470 = vmatpush1.msra.mxu0 0.0
        %471 = vmatprep.subr.mxu0 0.0
        %472 = vmatpush1.msra.mxu0 0.0
        %473 = vmatprep.subr.mxu0 0.0
        %474 = vmatpush1.msra.mxu0 0.0
        %475 = vmatprep.subr.mxu0 0.0
        %476 = vmatpush1.msra.mxu0 0.0
        %477 = vmatprep.subr.mxu0 0.0
        %478 = vmatpush1.msra.mxu0 0.0
        %479 = vmatprep.subr.mxu0 0.0
        %480 = vmatpush1.msra.mxu0 0.0
        %481 = vmatprep.subr.mxu0 0.0
        %482 = vmatpush1.msra.mxu0 0.0
        %483 = vmatprep.subr.mxu0 0.0
        %484 = vmatpush1.msra.mxu0 0.0
        %485 = vmatprep.subr.mxu0 0.0
        %486 = vmatpush1.msra.mxu0 0.0
        %487 = vmatprep.subr.mxu0 0.0
        %488 = vmatpush1.msra.mxu0 0.0
        %489 = vmatprep.subr.mxu0 0.0
        %490 = vmatpush1.msra.mxu0 0.0
        %491 = vmatprep.subr.mxu0 0.0
        %492 = vmatpush1.msra.mxu0 0.0
        %493 = vmatprep.subr.mxu0 0.0
        %494 = vmatpush1.msra.mxu0 0.0
        %495 = vmatprep.subr.mxu0 0.0
        %496 = vmatpush1.msra.mxu0 0.0
        %497 = vmatprep.subr.mxu0 0.0
        %498 = vmatpush1.msra.mxu0 0.0
        %499 = vmatprep.subr.mxu0 0.0
        %500 = vmatpush1.msra.mxu0 0.0
        %501 = vmatprep.subr.mxu0 0.0
        %502 = vmatpush1.msra.mxu0 0.0
        %503 = vmatprep.subr.mxu0 0.0
        %504 = vmatpush1.msra.mxu0 0.0
        %505 = vmatprep.subr.mxu0 0.0
        %506 = vmatpush1.msra.mxu0 0.0
        %507 = vmatprep.subr.mxu0 0.0
        %508 = vmatpush1.msra.mxu0 0.0
        %509 = vmatprep.subr.mxu0 0.0
        %510 = vmatpush1.msra.mxu0 0.0
        %511 = vmatprep.mubr.f32.mxu0 0.0
        %512 = vmatmul.mubr.f32.gmra.mrb[0].mxu0 %v368
        %v513 = vpop.f32.mrb[0].mxu0
        %v514 = vadd.f32 %v364, %v513
        %v515 = vpop.f32.mrb[0].mxu0
        %516 = vdwg.mxu0
        %v517 = vld [vmem:[%s196] sm:$0xff]
        %v518 = vld [vmem:[%s196 + $0x8] sm:$0xf]
        %s519 = scalar_lea.vmem %s1, 16
        %v520 = vld [vmem:[%s519] sm:$0xff]
        %v523 = vcombine.high %v517, %v517
        %524 = vrot.lane.b32.xlu0 %v517, 126
        %v525 = vpop.permute.xlu0 %524
        %526 = vrot.lane.b32.xlu0 %v523, 126
        %v527 = vpop.permute.xlu0 %526
        %528 = vrot.lane.b32.xlu0 %v518, 126
        %v529 = vpop.permute.xlu0 %528
        %vm530 = vcmask 1031168
        %v531 = vsel %vm530, %v525, %v527
        %v532 = vsel %vm530, %v527, %v529
        %v534 = vsel %vm215, %v520, 0
        %v536 = vsel %vm219, %v531, 0
        %v538 = vsel %vm219, %v532, 0
        %v540 = vsel %vm219, %v529, 0
        %542 = vmatprep.subr.mxu0 %v538
        %543 = vmatpush1.msra.mxu0 %v536
        %544 = vmatprep.subr.mxu0 0.0
        %545 = vmatpush1.msra.mxu0 0.0
        %546 = vmatprep.subr.mxu0 0.0
        %547 = vmatpush1.msra.mxu0 0.0
        %548 = vmatprep.subr.mxu0 0.0
        %549 = vmatpush1.msra.mxu0 0.0
        %550 = vmatprep.subr.mxu0 0.0
        %551 = vmatpush1.msra.mxu0 0.0
        %552 = vmatprep.subr.mxu0 0.0
        %553 = vmatpush1.msra.mxu0 0.0
        %554 = vmatprep.subr.mxu0 0.0
        %555 = vmatpush1.msra.mxu0 0.0
        %556 = vmatprep.subr.mxu0 0.0
        %557 = vmatpush1.msra.mxu0 0.0
        %558 = vmatprep.subr.mxu0 0.0
        %559 = vmatpush1.msra.mxu0 0.0
        %560 = vmatprep.subr.mxu0 0.0
        %561 = vmatpush1.msra.mxu0 0.0
        %562 = vmatprep.subr.mxu0 0.0
        %563 = vmatpush1.msra.mxu0 0.0
        %564 = vmatprep.subr.mxu0 0.0
        %565 = vmatpush1.msra.mxu0 0.0
        %566 = vmatprep.subr.mxu0 0.0
        %567 = vmatpush1.msra.mxu0 0.0
        %568 = vmatprep.subr.mxu0 0.0
        %569 = vmatpush1.msra.mxu0 0.0
        %570 = vmatprep.subr.mxu0 0.0
        %571 = vmatpush1.msra.mxu0 0.0
        %572 = vmatprep.subr.mxu0 0.0
        %573 = vmatpush1.msra.mxu0 0.0
        %574 = vmatprep.subr.mxu0 0.0
        %575 = vmatpush1.msra.mxu0 0.0
        %576 = vmatprep.subr.mxu0 0.0
        %577 = vmatpush1.msra.mxu0 0.0
        %578 = vmatprep.subr.mxu0 0.0
        %579 = vmatpush1.msra.mxu0 0.0
        %580 = vmatprep.subr.mxu0 0.0
        %581 = vmatpush1.msra.mxu0 0.0
        %582 = vmatprep.subr.mxu0 0.0
        %583 = vmatpush1.msra.mxu0 0.0
        %584 = vmatprep.subr.mxu0 0.0
        %585 = vmatpush1.msra.mxu0 0.0
        %586 = vmatprep.subr.mxu0 0.0
        %587 = vmatpush1.msra.mxu0 0.0
        %588 = vmatprep.subr.mxu0 0.0
        %589 = vmatpush1.msra.mxu0 0.0
        %590 = vmatprep.subr.mxu0 0.0
        %591 = vmatpush1.msra.mxu0 0.0
        %592 = vmatprep.subr.mxu0 0.0
        %593 = vmatpush1.msra.mxu0 0.0
        %594 = vmatprep.subr.mxu0 0.0
        %595 = vmatpush1.msra.mxu0 0.0
        %596 = vmatprep.subr.mxu0 0.0
        %597 = vmatpush1.msra.mxu0 0.0
        %598 = vmatprep.subr.mxu0 0.0
        %599 = vmatpush1.msra.mxu0 0.0
        %600 = vmatprep.subr.mxu0 0.0
        %601 = vmatpush1.msra.mxu0 0.0
        %602 = vmatprep.subr.mxu0 0.0
        %603 = vmatpush1.msra.mxu0 0.0
        %604 = vmatprep.subr.mxu0 0.0
        %605 = vmatpush1.msra.mxu0 0.0
        %606 = vmatprep.mubr.f32.mxu0 0.0
        %607 = vmatmul.mubr.f32.gmra.mrb[0].mxu0 %v534
        %v608 = vpop.f32.mrb[0].mxu0
        %v609 = vadd.f32 0.0, %v608
        %v610 = vpop.f32.mrb[0].mxu0
        %v611 = vadd.f32 0.0, %v610
        %612 = vdwg.mxu0
        %613 = vmatprep.subr.mxu0 0.0
        %614 = vmatpush1.msra.mxu0 %v540
        %615 = vmatprep.subr.mxu0 0.0
        %616 = vmatpush1.msra.mxu0 0.0
        %617 = vmatprep.subr.mxu0 0.0
        %618 = vmatpush1.msra.mxu0 0.0
        %619 = vmatprep.subr.mxu0 0.0
        %620 = vmatpush1.msra.mxu0 0.0
        %621 = vmatprep.subr.mxu0 0.0
        %622 = vmatpush1.msra.mxu0 0.0
        %623 = vmatprep.subr.mxu0 0.0
        %624 = vmatpush1.msra.mxu0 0.0
        %625 = vmatprep.subr.mxu0 0.0
        %626 = vmatpush1.msra.mxu0 0.0
        %627 = vmatprep.subr.mxu0 0.0
        %628 = vmatpush1.msra.mxu0 0.0
        %629 = vmatprep.subr.mxu0 0.0
        %630 = vmatpush1.msra.mxu0 0.0
        %631 = vmatprep.subr.mxu0 0.0
        %632 = vmatpush1.msra.mxu0 0.0
        %633 = vmatprep.subr.mxu0 0.0
        %634 = vmatpush1.msra.mxu0 0.0
        %635 = vmatprep.subr.mxu0 0.0
        %636 = vmatpush1.msra.mxu0 0.0
        %637 = vmatprep.subr.mxu0 0.0
        %638 = vmatpush1.msra.mxu0 0.0
        %639 = vmatprep.subr.mxu0 0.0
        %640 = vmatpush1.msra.mxu0 0.0
        %641 = vmatprep.subr.mxu0 0.0
        %642 = vmatpush1.msra.mxu0 0.0
        %643 = vmatprep.subr.mxu0 0.0
        %644 = vmatpush1.msra.mxu0 0.0
        %645 = vmatprep.subr.mxu0 0.0
        %646 = vmatpush1.msra.mxu0 0.0
        %647 = vmatprep.subr.mxu0 0.0
        %648 = vmatpush1.msra.mxu0 0.0
        %649 = vmatprep.subr.mxu0 0.0
        %650 = vmatpush1.msra.mxu0 0.0
        %651 = vmatprep.subr.mxu0 0.0
        %652 = vmatpush1.msra.mxu0 0.0
        %653 = vmatprep.subr.mxu0 0.0
        %654 = vmatpush1.msra.mxu0 0.0
        %655 = vmatprep.subr.mxu0 0.0
        %656 = vmatpush1.msra.mxu0 0.0
        %657 = vmatprep.subr.mxu0 0.0
        %658 = vmatpush1.msra.mxu0 0.0
        %659 = vmatprep.subr.mxu0 0.0
        %660 = vmatpush1.msra.mxu0 0.0
        %661 = vmatprep.subr.mxu0 0.0
        %662 = vmatpush1.msra.mxu0 0.0
        %663 = vmatprep.subr.mxu0 0.0
        %664 = vmatpush1.msra.mxu0 0.0
        %665 = vmatprep.subr.mxu0 0.0
        %666 = vmatpush1.msra.mxu0 0.0
        %667 = vmatprep.subr.mxu0 0.0
        %668 = vmatpush1.msra.mxu0 0.0
        %669 = vmatprep.subr.mxu0 0.0
        %670 = vmatpush1.msra.mxu0 0.0
        %671 = vmatprep.subr.mxu0 0.0
        %672 = vmatpush1.msra.mxu0 0.0
        %673 = vmatprep.subr.mxu0 0.0
        %674 = vmatpush1.msra.mxu0 0.0
        %675 = vmatprep.subr.mxu0 0.0
        %676 = vmatpush1.msra.mxu0 0.0
        %677 = vmatprep.mubr.f32.mxu0 0.0
        %678 = vmatmul.mubr.f32.gmra.mrb[0].mxu0 %v534
        %v679 = vpop.f32.mrb[0].mxu0
        %v680 = vadd.f32 0.0, %v679
        %v681 = vpop.f32.mrb[0].mxu0
        %682 = vdwg.mxu0
        %v683 = vadd.f32 %v443, %v609
        %v684 = vadd.f32 %v445, %v611
        %v685 = vadd.f32 %v514, %v680
        %v686 = vld [vmem:[%s196] sm:$0xff]
        %v687 = vld [vmem:[%s196 + $0x8] sm:$0xf]
        %s688 = scalar_lea.vmem %s1, 24
        %v689 = vld [vmem:[%s688] sm:$0xff]
        %v692 = vcombine.high %v686, %v686
        %693 = vrot.lane.b32.xlu0 %v686, 110
        %v694 = vpop.permute.xlu0 %693
        %695 = vrot.lane.b32.xlu0 %v692, 110
        %v696 = vpop.permute.xlu0 %695
        %697 = vrot.lane.b32.xlu0 %v687, 110
        %v698 = vpop.permute.xlu0 %697
        %vm699 = vcmask 900096
        %v700 = vsel %vm699, %v694, %v696
        %v701 = vsel %vm699, %v696, %v698
        %v703 = vsel %vm215, %v689, 0
        %v705 = vsel %vm219, %v700, 0
        %v707 = vsel %vm219, %v701, 0
        %v709 = vsel %vm219, %v698, 0
        %711 = vmatprep.subr.mxu0 %v707
        %712 = vmatpush1.msra.mxu0 %v705
        %713 = vmatprep.subr.mxu0 0.0
        %714 = vmatpush1.msra.mxu0 0.0
        %715 = vmatprep.subr.mxu0 0.0
        %716 = vmatpush1.msra.mxu0 0.0
        %717 = vmatprep.subr.mxu0 0.0
        %718 = vmatpush1.msra.mxu0 0.0
        %719 = vmatprep.subr.mxu0 0.0
        %720 = vmatpush1.msra.mxu0 0.0
        %721 = vmatprep.subr.mxu0 0.0
        %722 = vmatpush1.msra.mxu0 0.0
        %723 = vmatprep.subr.mxu0 0.0
        %724 = vmatpush1.msra.mxu0 0.0
        %725 = vmatprep.subr.mxu0 0.0
        %726 = vmatpush1.msra.mxu0 0.0
        %727 = vmatprep.subr.mxu0 0.0
        %728 = vmatpush1.msra.mxu0 0.0
        %729 = vmatprep.subr.mxu0 0.0
        %730 = vmatpush1.msra.mxu0 0.0
        %731 = vmatprep.subr.mxu0 0.0
        %732 = vmatpush1.msra.mxu0 0.0
        %733 = vmatprep.subr.mxu0 0.0
        %734 = vmatpush1.msra.mxu0 0.0
        %735 = vmatprep.subr.mxu0 0.0
        %736 = vmatpush1.msra.mxu0 0.0
        %737 = vmatprep.subr.mxu0 0.0
        %738 = vmatpush1.msra.mxu0 0.0
        %739 = vmatprep.subr.mxu0 0.0
        %740 = vmatpush1.msra.mxu0 0.0
        %741 = vmatprep.subr.mxu0 0.0
        %742 = vmatpush1.msra.mxu0 0.0
        %743 = vmatprep.subr.mxu0 0.0
        %744 = vmatpush1.msra.mxu0 0.0
        %745 = vmatprep.subr.mxu0 0.0
        %746 = vmatpush1.msra.mxu0 0.0
        %747 = vmatprep.subr.mxu0 0.0
        %748 = vmatpush1.msra.mxu0 0.0
        %749 = vmatprep.subr.mxu0 0.0
        %750 = vmatpush1.msra.mxu0 0.0
        %751 = vmatprep.subr.mxu0 0.0
        %752 = vmatpush1.msra.mxu0 0.0
        %753 = vmatprep.subr.mxu0 0.0
        %754 = vmatpush1.msra.mxu0 0.0
        %755 = vmatprep.subr.mxu0 0.0
        %756 = vmatpush1.msra.mxu0 0.0
        %757 = vmatprep.subr.mxu0 0.0
        %758 = vmatpush1.msra.mxu0 0.0
        %759 = vmatprep.subr.mxu0 0.0
        %760 = vmatpush1.msra.mxu0 0.0
        %761 = vmatprep.subr.mxu0 0.0
        %762 = vmatpush1.msra.mxu0 0.0
        %763 = vmatprep.subr.mxu0 0.0
        %764 = vmatpush1.msra.mxu0 0.0
        %765 = vmatprep.subr.mxu0 0.0
        %766 = vmatpush1.msra.mxu0 0.0
        %767 = vmatprep.subr.mxu0 0.0
        %768 = vmatpush1.msra.mxu0 0.0
        %769 = vmatprep.subr.mxu0 0.0
        %770 = vmatpush1.msra.mxu0 0.0
        %771 = vmatprep.subr.mxu0 0.0
        %772 = vmatpush1.msra.mxu0 0.0
        %773 = vmatprep.subr.mxu0 0.0
        %774 = vmatpush1.msra.mxu0 0.0
        %775 = vmatprep.mubr.f32.mxu0 0.0
        %776 = vmatmul.mubr.f32.gmra.mrb[0].mxu0 %v703
        %v777 = vpop.f32.mrb[0].mxu0
        %v778 = vadd.f32 0.0, %v777
        %v779 = vpop.f32.mrb[0].mxu0
        %v780 = vadd.f32 0.0, %v779
        %781 = vdwg.mxu0
        %782 = vmatprep.subr.mxu0 0.0
        %783 = vmatpush1.msra.mxu0 %v709
        %784 = vmatprep.subr.mxu0 0.0
        %785 = vmatpush1.msra.mxu0 0.0
        %786 = vmatprep.subr.mxu0 0.0
        %787 = vmatpush1.msra.mxu0 0.0
        %788 = vmatprep.subr.mxu0 0.0
        %789 = vmatpush1.msra.mxu0 0.0
        %790 = vmatprep.subr.mxu0 0.0
        %791 = vmatpush1.msra.mxu0 0.0
        %792 = vmatprep.subr.mxu0 0.0
        %793 = vmatpush1.msra.mxu0 0.0
        %794 = vmatprep.subr.mxu0 0.0
        %795 = vmatpush1.msra.mxu0 0.0
        %796 = vmatprep.subr.mxu0 0.0
        %797 = vmatpush1.msra.mxu0 0.0
        %798 = vmatprep.subr.mxu0 0.0
        %799 = vmatpush1.msra.mxu0 0.0
        %800 = vmatprep.subr.mxu0 0.0
        %801 = vmatpush1.msra.mxu0 0.0
        %802 = vmatprep.subr.mxu0 0.0
        %803 = vmatpush1.msra.mxu0 0.0
        %804 = vmatprep.subr.mxu0 0.0
        %805 = vmatpush1.msra.mxu0 0.0
        %806 = vmatprep.subr.mxu0 0.0
        %807 = vmatpush1.msra.mxu0 0.0
        %808 = vmatprep.subr.mxu0 0.0
        %809 = vmatpush1.msra.mxu0 0.0
        %810 = vmatprep.subr.mxu0 0.0
        %811 = vmatpush1.msra.mxu0 0.0
        %812 = vmatprep.subr.mxu0 0.0
        %813 = vmatpush1.msra.mxu0 0.0
        %814 = vmatprep.subr.mxu0 0.0
        %815 = vmatpush1.msra.mxu0 0.0
        %816 = vmatprep.subr.mxu0 0.0
        %817 = vmatpush1.msra.mxu0 0.0
        %818 = vmatprep.subr.mxu0 0.0
        %819 = vmatpush1.msra.mxu0 0.0
        %820 = vmatprep.subr.mxu0 0.0
        %821 = vmatpush1.msra.mxu0 0.0
        %822 = vmatprep.subr.mxu0 0.0
        %823 = vmatpush1.msra.mxu0 0.0
        %824 = vmatprep.subr.mxu0 0.0
        %825 = vmatpush1.msra.mxu0 0.0
        %826 = vmatprep.subr.mxu0 0.0
        %827 = vmatpush1.msra.mxu0 0.0
        %828 = vmatprep.subr.mxu0 0.0
        %829 = vmatpush1.msra.mxu0 0.0
        %830 = vmatprep.subr.mxu0 0.0
        %831 = vmatpush1.msra.mxu0 0.0
        %832 = vmatprep.subr.mxu0 0.0
        %833 = vmatpush1.msra.mxu0 0.0
        %834 = vmatprep.subr.mxu0 0.0
        %835 = vmatpush1.msra.mxu0 0.0
        %836 = vmatprep.subr.mxu0 0.0
        %837 = vmatpush1.msra.mxu0 0.0
        %838 = vmatprep.subr.mxu0 0.0
        %839 = vmatpush1.msra.mxu0 0.0
        %840 = vmatprep.subr.mxu0 0.0
        %841 = vmatpush1.msra.mxu0 0.0
        %842 = vmatprep.subr.mxu0 0.0
        %843 = vmatpush1.msra.mxu0 0.0
        %844 = vmatprep.subr.mxu0 0.0
        %845 = vmatpush1.msra.mxu0 0.0
        %846 = vmatprep.mubr.f32.mxu0 0.0
        %847 = vmatmul.mubr.f32.gmra.mrb[0].mxu0 %v703
        %v848 = vpop.f32.mrb[0].mxu0
        %v849 = vadd.f32 0.0, %v848
        %v850 = vpop.f32.mrb[0].mxu0
        %851 = vdwg.mxu0
        %v852 = vadd.f32 %v683, %v778
        %v853 = vadd.f32 %v684, %v780
        %v854 = vadd.f32 %v685, %v849
        %v855 = vld [vmem:[%s196] sm:$0xff]
        %v856 = vld [vmem:[%s196 + $0x8] sm:$0xf]
        %s857 = scalar_lea.vmem %s1, 32
        %v858 = vld [vmem:[%s857] sm:$0xff]
        %v861 = vcombine.high %v855, %v855
        %862 = vrot.lane.b32.xlu0 %v855, 109
        %v863 = vpop.permute.xlu0 %862
        %864 = vrot.lane.b32.xlu0 %v861, 109
        %v865 = vpop.permute.xlu0 %864
        %866 = vrot.lane.b32.xlu0 %v856, 109
        %v867 = vpop.permute.xlu0 %866
        %vm868 = vcmask 891904
        %v869 = vsel %vm868, %v863, %v865
        %v870 = vsel %vm868, %v865, %v867
        %v872 = vsel %vm215, %v858, 0
        %v874 = vsel %vm219, %v869, 0
        %v876 = vsel %vm219, %v870, 0
        %v878 = vsel %vm219, %v867, 0
        %880 = vmatprep.subr.mxu0 %v876
        %881 = vmatpush1.msra.mxu0 %v874
        %882 = vmatprep.subr.mxu0 0.0
        %883 = vmatpush1.msra.mxu0 0.0
        %884 = vmatprep.subr.mxu0 0.0
        %885 = vmatpush1.msra.mxu0 0.0
        %886 = vmatprep.subr.mxu0 0.0
        %887 = vmatpush1.msra.mxu0 0.0
        %888 = vmatprep.subr.mxu0 0.0
        %889 = vmatpush1.msra.mxu0 0.0
        %890 = vmatprep.subr.mxu0 0.0
        %891 = vmatpush1.msra.mxu0 0.0
        %892 = vmatprep.subr.mxu0 0.0
        %893 = vmatpush1.msra.mxu0 0.0
        %894 = vmatprep.subr.mxu0 0.0
        %895 = vmatpush1.msra.mxu0 0.0
        %896 = vmatprep.subr.mxu0 0.0
        %897 = vmatpush1.msra.mxu0 0.0
        %898 = vmatprep.subr.mxu0 0.0
        %899 = vmatpush1.msra.mxu0 0.0
        %900 = vmatprep.subr.mxu0 0.0
        %901 = vmatpush1.msra.mxu0 0.0
        %902 = vmatprep.subr.mxu0 0.0
        %903 = vmatpush1.msra.mxu0 0.0
        %904 = vmatprep.subr.mxu0 0.0
        %905 = vmatpush1.msra.mxu0 0.0
        %906 = vmatprep.subr.mxu0 0.0
        %907 = vmatpush1.msra.mxu0 0.0
        %908 = vmatprep.subr.mxu0 0.0
        %909 = vmatpush1.msra.mxu0 0.0
        %910 = vmatprep.subr.mxu0 0.0
        %911 = vmatpush1.msra.mxu0 0.0
        %912 = vmatprep.subr.mxu0 0.0
        %913 = vmatpush1.msra.mxu0 0.0
        %914 = vmatprep.subr.mxu0 0.0
        %915 = vmatpush1.msra.mxu0 0.0
        %916 = vmatprep.subr.mxu0 0.0
        %917 = vmatpush1.msra.mxu0 0.0
        %918 = vmatprep.subr.mxu0 0.0
        %919 = vmatpush1.msra.mxu0 0.0
        %920 = vmatprep.subr.mxu0 0.0
        %921 = vmatpush1.msra.mxu0 0.0
        %922 = vmatprep.subr.mxu0 0.0
        %923 = vmatpush1.msra.mxu0 0.0
        %924 = vmatprep.subr.mxu0 0.0
        %925 = vmatpush1.msra.mxu0 0.0
        %926 = vmatprep.subr.mxu0 0.0
        %927 = vmatpush1.msra.mxu0 0.0
        %928 = vmatprep.subr.mxu0 0.0
        %929 = vmatpush1.msra.mxu0 0.0
        %930 = vmatprep.subr.mxu0 0.0
        %931 = vmatpush1.msra.mxu0 0.0
        %932 = vmatprep.subr.mxu0 0.0
        %933 = vmatpush1.msra.mxu0 0.0
        %934 = vmatprep.subr.mxu0 0.0
        %935 = vmatpush1.msra.mxu0 0.0
        %936 = vmatprep.subr.mxu0 0.0
        %937 = vmatpush1.msra.mxu0 0.0
        %938 = vmatprep.subr.mxu0 0.0
        %939 = vmatpush1.msra.mxu0 0.0
        %940 = vmatprep.subr.mxu0 0.0
        %941 = vmatpush1.msra.mxu0 0.0
        %942 = vmatprep.subr.mxu0 0.0
        %943 = vmatpush1.msra.mxu0 0.0
        %944 = vmatprep.mubr.f32.mxu0 0.0
        %945 = vmatmul.mubr.f32.gmra.mrb[0].mxu0 %v872
        %v946 = vpop.f32.mrb[0].mxu0
        %v947 = vadd.f32 0.0, %v946
        %v948 = vpop.f32.mrb[0].mxu0
        %v949 = vadd.f32 0.0, %v948
        %950 = vdwg.mxu0
        %951 = vmatprep.subr.mxu0 0.0
        %952 = vmatpush1.msra.mxu0 %v878
        %953 = vmatprep.subr.mxu0 0.0
        %954 = vmatpush1.msra.mxu0 0.0
        %955 = vmatprep.subr.mxu0 0.0
        %956 = vmatpush1.msra.mxu0 0.0
        %957 = vmatprep.subr.mxu0 0.0
        %958 = vmatpush1.msra.mxu0 0.0
        %959 = vmatprep.subr.mxu0 0.0
        %960 = vmatpush1.msra.mxu0 0.0
        %961 = vmatprep.subr.mxu0 0.0
        %962 = vmatpush1.msra.mxu0 0.0
        %963 = vmatprep.subr.mxu0 0.0
        %964 = vmatpush1.msra.mxu0 0.0
        %965 = vmatprep.subr.mxu0 0.0
        %966 = vmatpush1.msra.mxu0 0.0
        %967 = vmatprep.subr.mxu0 0.0
        %968 = vmatpush1.msra.mxu0 0.0
        %969 = vmatprep.subr.mxu0 0.0
        %970 = vmatpush1.msra.mxu0 0.0
        %971 = vmatprep.subr.mxu0 0.0
        %972 = vmatpush1.msra.mxu0 0.0
        %973 = vmatprep.subr.mxu0 0.0
        %974 = vmatpush1.msra.mxu0 0.0
        %975 = vmatprep.subr.mxu0 0.0
        %976 = vmatpush1.msra.mxu0 0.0
        %977 = vmatprep.subr.mxu0 0.0
        %978 = vmatpush1.msra.mxu0 0.0
        %979 = vmatprep.subr.mxu0 0.0
        %980 = vmatpush1.msra.mxu0 0.0
        %981 = vmatprep.subr.mxu0 0.0
        %982 = vmatpush1.msra.mxu0 0.0
        %983 = vmatprep.subr.mxu0 0.0
        %984 = vmatpush1.msra.mxu0 0.0
        %985 = vmatprep.subr.mxu0 0.0
        %986 = vmatpush1.msra.mxu0 0.0
        %987 = vmatprep.subr.mxu0 0.0
        %988 = vmatpush1.msra.mxu0 0.0
        %989 = vmatprep.subr.mxu0 0.0
        %990 = vmatpush1.msra.mxu0 0.0
        %991 = vmatprep.subr.mxu0 0.0
        %992 = vmatpush1.msra.mxu0 0.0
        %993 = vmatprep.subr.mxu0 0.0
        %994 = vmatpush1.msra.mxu0 0.0
        %995 = vmatprep.subr.mxu0 0.0
        %996 = vmatpush1.msra.mxu0 0.0
        %997 = vmatprep.subr.mxu0 0.0
        %998 = vmatpush1.msra.mxu0 0.0
        %999 = vmatprep.subr.mxu0 0.0
        %1000 = vmatpush1.msra.mxu0 0.0
        %1001 = vmatprep.subr.mxu0 0.0
        %1002 = vmatpush1.msra.mxu0 0.0
        %1003 = vmatprep.subr.mxu0 0.0
        %1004 = vmatpush1.msra.mxu0 0.0
        %1005 = vmatprep.subr.mxu0 0.0
        %1006 = vmatpush1.msra.mxu0 0.0
        %1007 = vmatprep.subr.mxu0 0.0
        %1008 = vmatpush1.msra.mxu0 0.0
        %1009 = vmatprep.subr.mxu0 0.0
        %1010 = vmatpush1.msra.mxu0 0.0
        %1011 = vmatprep.subr.mxu0 0.0
        %1012 = vmatpush1.msra.mxu0 0.0
        %1013 = vmatprep.subr.mxu0 0.0
        %1014 = vmatpush1.msra.mxu0 0.0
        %1015 = vmatprep.mubr.f32.mxu0 0.0
        %1016 = vmatmul.mubr.f32.gmra.mrb[0].mxu0 %v872
        %v1017 = vpop.f32.mrb[0].mxu0
        %v1018 = vadd.f32 0.0, %v1017
        %v1019 = vpop.f32.mrb[0].mxu0
        %1020 = vdwg.mxu0
        %v1021 = vadd.f32 %v852, %v947
        %v1022 = vadd.f32 %v853, %v949
        %v1023 = vadd.f32 %v854, %v1018
        %v1024 = vld [vmem:[%s196] sm:$0xff]
        %v1025 = vld [vmem:[%s196 + $0x8] sm:$0xf]
        %s1026 = scalar_lea.vmem %s1, 40
        %v1027 = vld [vmem:[%s1026] sm:$0xff]
        %v1030 = vcombine.high %v1024, %v1024
        %1031 = vrot.lane.b32.xlu0 %v1024, 108
        %v1032 = vpop.permute.xlu0 %1031
        %1033 = vrot.lane.b32.xlu0 %v1030, 108
        %v1034 = vpop.permute.xlu0 %1033
        %1035 = vrot.lane.b32.xlu0 %v1025, 108
        %v1036 = vpop.permute.xlu0 %1035
        %vm1037 = vcmask 883712
        %v1038 = vsel %vm1037, %v1032, %v1034
        %v1039 = vsel %vm1037, %v1034, %v1036
        %v1041 = vsel %vm215, %v1027, 0
        %v1043 = vsel %vm219, %v1038, 0
        %v1045 = vsel %vm219, %v1039, 0
        %v1047 = vsel %vm219, %v1036, 0
        %1049 = vmatprep.subr.mxu0 %v1045
        %1050 = vmatpush1.msra.mxu0 %v1043
        %1051 = vmatprep.subr.mxu0 0.0
        %1052 = vmatpush1.msra.mxu0 0.0
        %1053 = vmatprep.subr.mxu0 0.0
        %1054 = vmatpush1.msra.mxu0 0.0
        %1055 = vmatprep.subr.mxu0 0.0
        %1056 = vmatpush1.msra.mxu0 0.0
        %1057 = vmatprep.subr.mxu0 0.0
        %1058 = vmatpush1.msra.mxu0 0.0
        %1059 = vmatprep.subr.mxu0 0.0
        %1060 = vmatpush1.msra.mxu0 0.0
        %1061 = vmatprep.subr.mxu0 0.0
        %1062 = vmatpush1.msra.mxu0 0.0
        %1063 = vmatprep.subr.mxu0 0.0
        %1064 = vmatpush1.msra.mxu0 0.0
        %1065 = vmatprep.subr.mxu0 0.0
        %1066 = vmatpush1.msra.mxu0 0.0
        %1067 = vmatprep.subr.mxu0 0.0
        %1068 = vmatpush1.msra.mxu0 0.0
        %1069 = vmatprep.subr.mxu0 0.0
        %1070 = vmatpush1.msra.mxu0 0.0
        %1071 = vmatprep.subr.mxu0 0.0
        %1072 = vmatpush1.msra.mxu0 0.0
        %1073 = vmatprep.subr.mxu0 0.0
        %1074 = vmatpush1.msra.mxu0 0.0
        %1075 = vmatprep.subr.mxu0 0.0
        %1076 = vmatpush1.msra.mxu0 0.0
        %1077 = vmatprep.subr.mxu0 0.0
        %1078 = vmatpush1.msra.mxu0 0.0
        %1079 = vmatprep.subr.mxu0 0.0
        %1080 = vmatpush1.msra.mxu0 0.0
        %1081 = vmatprep.subr.mxu0 0.0
        %1082 = vmatpush1.msra.mxu0 0.0
        %1083 = vmatprep.subr.mxu0 0.0
        %1084 = vmatpush1.msra.mxu0 0.0
        %1085 = vmatprep.subr.mxu0 0.0
        %1086 = vmatpush1.msra.mxu0 0.0
        %1087 = vmatprep.subr.mxu0 0.0
        %1088 = vmatpush1.msra.mxu0 0.0
        %1089 = vmatprep.subr.mxu0 0.0
        %1090 = vmatpush1.msra.mxu0 0.0
        %1091 = vmatprep.subr.mxu0 0.0
        %1092 = vmatpush1.msra.mxu0 0.0
        %1093 = vmatprep.subr.mxu0 0.0
        %1094 = vmatpush1.msra.mxu0 0.0
        %1095 = vmatprep.subr.mxu0 0.0
        %1096 = vmatpush1.msra.mxu0 0.0
        %1097 = vmatprep.subr.mxu0 0.0
        %1098 = vmatpush1.msra.mxu0 0.0
        %1099 = vmatprep.subr.mxu0 0.0
        %1100 = vmatpush1.msra.mxu0 0.0
        %1101 = vmatprep.subr.mxu0 0.0
        %1102 = vmatpush1.msra.mxu0 0.0
        %1103 = vmatprep.subr.mxu0 0.0
        %1104 = vmatpush1.msra.mxu0 0.0
        %1105 = vmatprep.subr.mxu0 0.0
        %1106 = vmatpush1.msra.mxu0 0.0
        %1107 = vmatprep.subr.mxu0 0.0
        %1108 = vmatpush1.msra.mxu0 0.0
        %1109 = vmatprep.subr.mxu0 0.0
        %1110 = vmatpush1.msra.mxu0 0.0
        %1111 = vmatprep.subr.mxu0 0.0
        %1112 = vmatpush1.msra.mxu0 0.0
        %1113 = vmatprep.mubr.f32.mxu0 0.0
        %1114 = vmatmul.mubr.f32.gmra.mrb[0].mxu0 %v1041
        %v1115 = vpop.f32.mrb[0].mxu0
        %v1116 = vadd.f32 0.0, %v1115
        %v1117 = vpop.f32.mrb[0].mxu0
        %v1118 = vadd.f32 0.0, %v1117
        %1119 = vdwg.mxu0
        %1120 = vmatprep.subr.mxu0 0.0
        %1121 = vmatpush1.msra.mxu0 %v1047
        %1122 = vmatprep.subr.mxu0 0.0
        %1123 = vmatpush1.msra.mxu0 0.0
        %1124 = vmatprep.subr.mxu0 0.0
        %1125 = vmatpush1.msra.mxu0 0.0
        %1126 = vmatprep.subr.mxu0 0.0
        %1127 = vmatpush1.msra.mxu0 0.0
        %1128 = vmatprep.subr.mxu0 0.0
        %1129 = vmatpush1.msra.mxu0 0.0
        %1130 = vmatprep.subr.mxu0 0.0
        %1131 = vmatpush1.msra.mxu0 0.0
        %1132 = vmatprep.subr.mxu0 0.0
        %1133 = vmatpush1.msra.mxu0 0.0
        %1134 = vmatprep.subr.mxu0 0.0
        %1135 = vmatpush1.msra.mxu0 0.0
        %1136 = vmatprep.subr.mxu0 0.0
        %1137 = vmatpush1.msra.mxu0 0.0
        %1138 = vmatprep.subr.mxu0 0.0
        %1139 = vmatpush1.msra.mxu0 0.0
        %1140 = vmatprep.subr.mxu0 0.0
        %1141 = vmatpush1.msra.mxu0 0.0
        %1142 = vmatprep.subr.mxu0 0.0
        %1143 = vmatpush1.msra.mxu0 0.0
        %1144 = vmatprep.subr.mxu0 0.0
        %1145 = vmatpush1.msra.mxu0 0.0
        %1146 = vmatprep.subr.mxu0 0.0
        %1147 = vmatpush1.msra.mxu0 0.0
        %1148 = vmatprep.subr.mxu0 0.0
        %1149 = vmatpush1.msra.mxu0 0.0
        %1150 = vmatprep.subr.mxu0 0.0
        %1151 = vmatpush1.msra.mxu0 0.0
        %1152 = vmatprep.subr.mxu0 0.0
        %1153 = vmatpush1.msra.mxu0 0.0
        %1154 = vmatprep.subr.mxu0 0.0
        %1155 = vmatpush1.msra.mxu0 0.0
        %1156 = vmatprep.subr.mxu0 0.0
        %1157 = vmatpush1.msra.mxu0 0.0
        %1158 = vmatprep.subr.mxu0 0.0
        %1159 = vmatpush1.msra.mxu0 0.0
        %1160 = vmatprep.subr.mxu0 0.0
        %1161 = vmatpush1.msra.mxu0 0.0
        %1162 = vmatprep.subr.mxu0 0.0
        %1163 = vmatpush1.msra.mxu0 0.0
        %1164 = vmatprep.subr.mxu0 0.0
        %1165 = vmatpush1.msra.mxu0 0.0
        %1166 = vmatprep.subr.mxu0 0.0
        %1167 = vmatpush1.msra.mxu0 0.0
        %1168 = vmatprep.subr.mxu0 0.0
        %1169 = vmatpush1.msra.mxu0 0.0
        %1170 = vmatprep.subr.mxu0 0.0
        %1171 = vmatpush1.msra.mxu0 0.0
        %1172 = vmatprep.subr.mxu0 0.0
        %1173 = vmatpush1.msra.mxu0 0.0
        %1174 = vmatprep.subr.mxu0 0.0
        %1175 = vmatpush1.msra.mxu0 0.0
        %1176 = vmatprep.subr.mxu0 0.0
        %1177 = vmatpush1.msra.mxu0 0.0
        %1178 = vmatprep.subr.mxu0 0.0
        %1179 = vmatpush1.msra.mxu0 0.0
        %1180 = vmatprep.subr.mxu0 0.0
        %1181 = vmatpush1.msra.mxu0 0.0
        %1182 = vmatprep.subr.mxu0 0.0
        %1183 = vmatpush1.msra.mxu0 0.0
        %1184 = vmatprep.mubr.f32.mxu0 0.0
        %1185 = vmatmul.mubr.f32.gmra.mrb[0].mxu0 %v1041
        %v1186 = vpop.f32.mrb[0].mxu0
        %v1187 = vadd.f32 0.0, %v1186
        %v1188 = vpop.f32.mrb[0].mxu0
        %1189 = vdwg.mxu0
        %v1190 = vadd.f32 %v1021, %v1116
        %v1191 = vadd.f32 %v1022, %v1118
        %v1192 = vadd.f32 %v1023, %v1187
        %v1193 = vld [vmem:[%s196] sm:$0xff]
        %v1194 = vld [vmem:[%s196 + $0x8] sm:$0xf]
        %s1195 = scalar_lea.vmem %s1, 48
        %v1196 = vld [vmem:[%s1195] sm:$0xff]
        %v1199 = vcombine.high %v1193, %v1193
        %1200 = vrot.lane.b32.xlu0 %v1193, 92
        %v1201 = vpop.permute.xlu0 %1200
        %1202 = vrot.lane.b32.xlu0 %v1199, 92
        %v1203 = vpop.permute.xlu0 %1202
        %1204 = vrot.lane.b32.xlu0 %v1194, 92
        %v1205 = vpop.permute.xlu0 %1204
        %vm1206 = vcmask 752640
        %v1207 = vsel %vm1206, %v1201, %v1203
        %v1208 = vsel %vm1206, %v1203, %v1205
        %v1210 = vsel %vm215, %v1196, 0
        %v1212 = vsel %vm219, %v1207, 0
        %v1214 = vsel %vm219, %v1208, 0
        %v1216 = vsel %vm219, %v1205, 0
        %1218 = vmatprep.subr.mxu0 %v1214
        %1219 = vmatpush1.msra.mxu0 %v1212
        %1220 = vmatprep.subr.mxu0 0.0
        %1221 = vmatpush1.msra.mxu0 0.0
        %1222 = vmatprep.subr.mxu0 0.0
        %1223 = vmatpush1.msra.mxu0 0.0
        %1224 = vmatprep.subr.mxu0 0.0
        %1225 = vmatpush1.msra.mxu0 0.0
        %1226 = vmatprep.subr.mxu0 0.0
        %1227 = vmatpush1.msra.mxu0 0.0
        %1228 = vmatprep.subr.mxu0 0.0
        %1229 = vmatpush1.msra.mxu0 0.0
        %1230 = vmatprep.subr.mxu0 0.0
        %1231 = vmatpush1.msra.mxu0 0.0
        %1232 = vmatprep.subr.mxu0 0.0
        %1233 = vmatpush1.msra.mxu0 0.0
        %1234 = vmatprep.subr.mxu0 0.0
        %1235 = vmatpush1.msra.mxu0 0.0
        %1236 = vmatprep.subr.mxu0 0.0
        %1237 = vmatpush1.msra.mxu0 0.0
        %1238 = vmatprep.subr.mxu0 0.0
        %1239 = vmatpush1.msra.mxu0 0.0
        %1240 = vmatprep.subr.mxu0 0.0
        %1241 = vmatpush1.msra.mxu0 0.0
        %1242 = vmatprep.subr.mxu0 0.0
        %1243 = vmatpush1.msra.mxu0 0.0
        %1244 = vmatprep.subr.mxu0 0.0
        %1245 = vmatpush1.msra.mxu0 0.0
        %1246 = vmatprep.subr.mxu0 0.0
        %1247 = vmatpush1.msra.mxu0 0.0
        %1248 = vmatprep.subr.mxu0 0.0
        %1249 = vmatpush1.msra.mxu0 0.0
        %1250 = vmatprep.subr.mxu0 0.0
        %1251 = vmatpush1.msra.mxu0 0.0
        %1252 = vmatprep.subr.mxu0 0.0
        %1253 = vmatpush1.msra.mxu0 0.0
        %1254 = vmatprep.subr.mxu0 0.0
        %1255 = vmatpush1.msra.mxu0 0.0
        %1256 = vmatprep.subr.mxu0 0.0
        %1257 = vmatpush1.msra.mxu0 0.0
        %1258 = vmatprep.subr.mxu0 0.0
        %1259 = vmatpush1.msra.mxu0 0.0
        %1260 = vmatprep.subr.mxu0 0.0
        %1261 = vmatpush1.msra.mxu0 0.0
        %1262 = vmatprep.subr.mxu0 0.0
        %1263 = vmatpush1.msra.mxu0 0.0
        %1264 = vmatprep.subr.mxu0 0.0
        %1265 = vmatpush1.msra.mxu0 0.0
        %1266 = vmatprep.subr.mxu0 0.0
        %1267 = vmatpush1.msra.mxu0 0.0
        %1268 = vmatprep.subr.mxu0 0.0
        %1269 = vmatpush1.msra.mxu0 0.0
        %1270 = vmatprep.subr.mxu0 0.0
        %1271 = vmatpush1.msra.mxu0 0.0
        %1272 = vmatprep.subr.mxu0 0.0
        %1273 = vmatpush1.msra.mxu0 0.0
        %1274 = vmatprep.subr.mxu0 0.0
        %1275 = vmatpush1.msra.mxu0 0.0
        %1276 = vmatprep.subr.mxu0 0.0
        %1277 = vmatpush1.msra.mxu0 0.0
        %1278 = vmatprep.subr.mxu0 0.0
        %1279 = vmatpush1.msra.mxu0 0.0
        %1280 = vmatprep.subr.mxu0 0.0
        %1281 = vmatpush1.msra.mxu0 0.0
        %1282 = vmatprep.mubr.f32.mxu0 0.0
        %1283 = vmatmul.mubr.f32.gmra.mrb[0].mxu0 %v1210
        %v1284 = vpop.f32.mrb[0].mxu0
        %v1285 = vadd.f32 0.0, %v1284
        %v1286 = vpop.f32.mrb[0].mxu0
        %v1287 = vadd.f32 0.0, %v1286
        %1288 = vdwg.mxu0
        %1289 = vmatprep.subr.mxu0 0.0
        %1290 = vmatpush1.msra.mxu0 %v1216
        %1291 = vmatprep.subr.mxu0 0.0
        %1292 = vmatpush1.msra.mxu0 0.0
        %1293 = vmatprep.subr.mxu0 0.0
        %1294 = vmatpush1.msra.mxu0 0.0
        %1295 = vmatprep.subr.mxu0 0.0
        %1296 = vmatpush1.msra.mxu0 0.0
        %1297 = vmatprep.subr.mxu0 0.0
        %1298 = vmatpush1.msra.mxu0 0.0
        %1299 = vmatprep.subr.mxu0 0.0
        %1300 = vmatpush1.msra.mxu0 0.0
        %1301 = vmatprep.subr.mxu0 0.0
        %1302 = vmatpush1.msra.mxu0 0.0
        %1303 = vmatprep.subr.mxu0 0.0
        %1304 = vmatpush1.msra.mxu0 0.0
        %1305 = vmatprep.subr.mxu0 0.0
        %1306 = vmatpush1.msra.mxu0 0.0
        %1307 = vmatprep.subr.mxu0 0.0
        %1308 = vmatpush1.msra.mxu0 0.0
        %1309 = vmatprep.subr.mxu0 0.0
        %1310 = vmatpush1.msra.mxu0 0.0
        %1311 = vmatprep.subr.mxu0 0.0
        %1312 = vmatpush1.msra.mxu0 0.0
        %1313 = vmatprep.subr.mxu0 0.0
        %1314 = vmatpush1.msra.mxu0 0.0
        %1315 = vmatprep.subr.mxu0 0.0
        %1316 = vmatpush1.msra.mxu0 0.0
        %1317 = vmatprep.subr.mxu0 0.0
        %1318 = vmatpush1.msra.mxu0 0.0
        %1319 = vmatprep.subr.mxu0 0.0
        %1320 = vmatpush1.msra.mxu0 0.0
        %1321 = vmatprep.subr.mxu0 0.0
        %1322 = vmatpush1.msra.mxu0 0.0
        %1323 = vmatprep.subr.mxu0 0.0
        %1324 = vmatpush1.msra.mxu0 0.0
        %1325 = vmatprep.subr.mxu0 0.0
        %1326 = vmatpush1.msra.mxu0 0.0
        %1327 = vmatprep.subr.mxu0 0.0
        %1328 = vmatpush1.msra.mxu0 0.0
        %1329 = vmatprep.subr.mxu0 0.0
        %1330 = vmatpush1.msra.mxu0 0.0
        %1331 = vmatprep.subr.mxu0 0.0
        %1332 = vmatpush1.msra.mxu0 0.0
        %1333 = vmatprep.subr.mxu0 0.0
        %1334 = vmatpush1.msra.mxu0 0.0
        %1335 = vmatprep.subr.mxu0 0.0
        %1336 = vmatpush1.msra.mxu0 0.0
        %1337 = vmatprep.subr.mxu0 0.0
        %1338 = vmatpush1.msra.mxu0 0.0
        %1339 = vmatprep.subr.mxu0 0.0
        %1340 = vmatpush1.msra.mxu0 0.0
        %1341 = vmatprep.subr.mxu0 0.0
        %1342 = vmatpush1.msra.mxu0 0.0
        %1343 = vmatprep.subr.mxu0 0.0
        %1344 = vmatpush1.msra.mxu0 0.0
        %1345 = vmatprep.subr.mxu0 0.0
        %1346 = vmatpush1.msra.mxu0 0.0
        %1347 = vmatprep.subr.mxu0 0.0
        %1348 = vmatpush1.msra.mxu0 0.0
        %1349 = vmatprep.subr.mxu0 0.0
        %1350 = vmatpush1.msra.mxu0 0.0
        %1351 = vmatprep.subr.mxu0 0.0
        %1352 = vmatpush1.msra.mxu0 0.0
        %1353 = vmatprep.mubr.f32.mxu0 0.0
        %1354 = vmatmul.mubr.f32.gmra.mrb[0].mxu0 %v1210
        %v1355 = vpop.f32.mrb[0].mxu0
        %v1356 = vadd.f32 0.0, %v1355
        %v1357 = vpop.f32.mrb[0].mxu0
        %1358 = vdwg.mxu0
        %v1359 = vadd.f32 %v1190, %v1285
        %v1360 = vadd.f32 %v1191, %v1287
        %v1361 = vadd.f32 %v1192, %v1356
        %v1362 = vld [vmem:[%s196] sm:$0xff]
        %v1363 = vld [vmem:[%s196 + $0x8] sm:$0xf]
        %s1364 = scalar_lea.vmem %s1, 56
        %v1365 = vld [vmem:[%s1364] sm:$0xff]
        %v1368 = vcombine.high %v1362, %v1362
        %1369 = vrot.lane.b32.xlu0 %v1362, 91
        %v1370 = vpop.permute.xlu0 %1369
        %1371 = vrot.lane.b32.xlu0 %v1368, 91
        %v1372 = vpop.permute.xlu0 %1371
        %1373 = vrot.lane.b32.xlu0 %v1363, 91
        %v1374 = vpop.permute.xlu0 %1373
        %vm1375 = vcmask 744448
        %v1376 = vsel %vm1375, %v1370, %v1372
        %v1377 = vsel %vm1375, %v1372, %v1374
        %v1379 = vsel %vm215, %v1365, 0
        %v1381 = vsel %vm219, %v1376, 0
        %v1383 = vsel %vm219, %v1377, 0
        %v1385 = vsel %vm219, %v1374, 0
        %1387 = vmatprep.subr.mxu0 %v1383
        %1388 = vmatpush1.msra.mxu0 %v1381
        %1389 = vmatprep.subr.mxu0 0.0
        %1390 = vmatpush1.msra.mxu0 0.0
        %1391 = vmatprep.subr.mxu0 0.0
        %1392 = vmatpush1.msra.mxu0 0.0
        %1393 = vmatprep.subr.mxu0 0.0
        %1394 = vmatpush1.msra.mxu0 0.0
        %1395 = vmatprep.subr.mxu0 0.0
        %1396 = vmatpush1.msra.mxu0 0.0
        %1397 = vmatprep.subr.mxu0 0.0
        %1398 = vmatpush1.msra.mxu0 0.0
        %1399 = vmatprep.subr.mxu0 0.0
        %1400 = vmatpush1.msra.mxu0 0.0
        %1401 = vmatprep.subr.mxu0 0.0
        %1402 = vmatpush1.msra.mxu0 0.0
        %1403 = vmatprep.subr.mxu0 0.0
        %1404 = vmatpush1.msra.mxu0 0.0
        %1405 = vmatprep.subr.mxu0 0.0
        %1406 = vmatpush1.msra.mxu0 0.0
        %1407 = vmatprep.subr.mxu0 0.0
        %1408 = vmatpush1.msra.mxu0 0.0
        %1409 = vmatprep.subr.mxu0 0.0
        %1410 = vmatpush1.msra.mxu0 0.0
        %1411 = vmatprep.subr.mxu0 0.0
        %1412 = vmatpush1.msra.mxu0 0.0
        %1413 = vmatprep.subr.mxu0 0.0
        %1414 = vmatpush1.msra.mxu0 0.0
        %1415 = vmatprep.subr.mxu0 0.0
        %1416 = vmatpush1.msra.mxu0 0.0
        %1417 = vmatprep.subr.mxu0 0.0
        %1418 = vmatpush1.msra.mxu0 0.0
        %1419 = vmatprep.subr.mxu0 0.0
        %1420 = vmatpush1.msra.mxu0 0.0
        %1421 = vmatprep.subr.mxu0 0.0
        %1422 = vmatpush1.msra.mxu0 0.0
        %1423 = vmatprep.subr.mxu0 0.0
        %1424 = vmatpush1.msra.mxu0 0.0
        %1425 = vmatprep.subr.mxu0 0.0
        %1426 = vmatpush1.msra.mxu0 0.0
        %1427 = vmatprep.subr.mxu0 0.0
        %1428 = vmatpush1.msra.mxu0 0.0
        %1429 = vmatprep.subr.mxu0 0.0
        %1430 = vmatpush1.msra.mxu0 0.0
        %1431 = vmatprep.subr.mxu0 0.0
        %1432 = vmatpush1.msra.mxu0 0.0
        %1433 = vmatprep.subr.mxu0 0.0
        %1434 = vmatpush1.msra.mxu0 0.0
        %1435 = vmatprep.subr.mxu0 0.0
        %1436 = vmatpush1.msra.mxu0 0.0
        %1437 = vmatprep.subr.mxu0 0.0
        %1438 = vmatpush1.msra.mxu0 0.0
        %1439 = vmatprep.subr.mxu0 0.0
        %1440 = vmatpush1.msra.mxu0 0.0
        %1441 = vmatprep.subr.mxu0 0.0
        %1442 = vmatpush1.msra.mxu0 0.0
        %1443 = vmatprep.subr.mxu0 0.0
        %1444 = vmatpush1.msra.mxu0 0.0
        %1445 = vmatprep.subr.mxu0 0.0
        %1446 = vmatpush1.msra.mxu0 0.0
        %1447 = vmatprep.subr.mxu0 0.0
        %1448 = vmatpush1.msra.mxu0 0.0
        %1449 = vmatprep.subr.mxu0 0.0
        %1450 = vmatpush1.msra.mxu0 0.0
        %1451 = vmatprep.mubr.f32.mxu0 0.0
        %1452 = vmatmul.mubr.f32.gmra.mrb[0].mxu0 %v1379
        %v1453 = vpop.f32.mrb[0].mxu0
        %v1454 = vadd.f32 0.0, %v1453
        %v1455 = vpop.f32.mrb[0].mxu0
        %v1456 = vadd.f32 0.0, %v1455
        %1457 = vdwg.mxu0
        %1458 = vmatprep.subr.mxu0 0.0
        %1459 = vmatpush1.msra.mxu0 %v1385
        %1460 = vmatprep.subr.mxu0 0.0
        %1461 = vmatpush1.msra.mxu0 0.0
        %1462 = vmatprep.subr.mxu0 0.0
        %1463 = vmatpush1.msra.mxu0 0.0
        %1464 = vmatprep.subr.mxu0 0.0
        %1465 = vmatpush1.msra.mxu0 0.0
        %1466 = vmatprep.subr.mxu0 0.0
        %1467 = vmatpush1.msra.mxu0 0.0
        %1468 = vmatprep.subr.mxu0 0.0
        %1469 = vmatpush1.msra.mxu0 0.0
        %1470 = vmatprep.subr.mxu0 0.0
        %1471 = vmatpush1.msra.mxu0 0.0
        %1472 = vmatprep.subr.mxu0 0.0
        %1473 = vmatpush1.msra.mxu0 0.0
        %1474 = vmatprep.subr.mxu0 0.0
        %1475 = vmatpush1.msra.mxu0 0.0
        %1476 = vmatprep.subr.mxu0 0.0
        %1477 = vmatpush1.msra.mxu0 0.0
        %1478 = vmatprep.subr.mxu0 0.0
        %1479 = vmatpush1.msra.mxu0 0.0
        %1480 = vmatprep.subr.mxu0 0.0
        %1481 = vmatpush1.msra.mxu0 0.0
        %1482 = vmatprep.subr.mxu0 0.0
        %1483 = vmatpush1.msra.mxu0 0.0
        %1484 = vmatprep.subr.mxu0 0.0
        %1485 = vmatpush1.msra.mxu0 0.0
        %1486 = vmatprep.subr.mxu0 0.0
        %1487 = vmatpush1.msra.mxu0 0.0
        %1488 = vmatprep.subr.mxu0 0.0
        %1489 = vmatpush1.msra.mxu0 0.0
        %1490 = vmatprep.subr.mxu0 0.0
        %1491 = vmatpush1.msra.mxu0 0.0
        %1492 = vmatprep.subr.mxu0 0.0
        %1493 = vmatpush1.msra.mxu0 0.0
        %1494 = vmatprep.subr.mxu0 0.0
        %1495 = vmatpush1.msra.mxu0 0.0
        %1496 = vmatprep.subr.mxu0 0.0
        %1497 = vmatpush1.msra.mxu0 0.0
        %1498 = vmatprep.subr.mxu0 0.0
        %1499 = vmatpush1.msra.mxu0 0.0
        %1500 = vmatprep.subr.mxu0 0.0
        %1501 = vmatpush1.msra.mxu0 0.0
        %1502 = vmatprep.subr.mxu0 0.0
        %1503 = vmatpush1.msra.mxu0 0.0
        %1504 = vmatprep.subr.mxu0 0.0
        %1505 = vmatpush1.msra.mxu0 0.0
        %1506 = vmatprep.subr.mxu0 0.0
        %1507 = vmatpush1.msra.mxu0 0.0
        %1508 = vmatprep.subr.mxu0 0.0
        %1509 = vmatpush1.msra.mxu0 0.0
        %1510 = vmatprep.subr.mxu0 0.0
        %1511 = vmatpush1.msra.mxu0 0.0
        %1512 = vmatprep.subr.mxu0 0.0
        %1513 = vmatpush1.msra.mxu0 0.0
        %1514 = vmatprep.subr.mxu0 0.0
        %1515 = vmatpush1.msra.mxu0 0.0
        %1516 = vmatprep.subr.mxu0 0.0
        %1517 = vmatpush1.msra.mxu0 0.0
        %1518 = vmatprep.subr.mxu0 0.0
        %1519 = vmatpush1.msra.mxu0 0.0
        %1520 = vmatprep.subr.mxu0 0.0
        %1521 = vmatpush1.msra.mxu0 0.0
        %1522 = vmatprep.mubr.f32.mxu0 0.0
        %1523 = vmatmul.mubr.f32.gmra.mrb[0].mxu0 %v1379
        %v1524 = vpop.f32.mrb[0].mxu0
        %v1525 = vadd.f32 0.0, %v1524
        %v1526 = vpop.f32.mrb[0].mxu0
        %1527 = vdwg.mxu0
        %v1528 = vadd.f32 %v1359, %v1454
        %v1529 = vadd.f32 %v1360, %v1456
        %v1530 = vadd.f32 %v1361, %v1525
        %v1531 = vld [vmem:[%s196] sm:$0xff]
        %v1532 = vld [vmem:[%s196 + $0x8] sm:$0xf]
        %s1533 = scalar_lea.vmem %s1, 64
        %v1534 = vld [vmem:[%s1533] sm:$0xff]
        %v1537 = vcombine.high %v1531, %v1531
        %1538 = vrot.lane.b32.xlu0 %v1531, 90
        %v1539 = vpop.permute.xlu0 %1538
        %1540 = vrot.lane.b32.xlu0 %v1537, 90
        %v1541 = vpop.permute.xlu0 %1540
        %1542 = vrot.lane.b32.xlu0 %v1532, 90
        %v1543 = vpop.permute.xlu0 %1542
        %vm1544 = vcmask 736256
        %v1545 = vsel %vm1544, %v1539, %v1541
        %v1546 = vsel %vm1544, %v1541, %v1543
        %v1548 = vsel %vm215, %v1534, 0
        %v1550 = vsel %vm219, %v1545, 0
        %v1552 = vsel %vm219, %v1546, 0
        %v1554 = vsel %vm219, %v1543, 0
        %1556 = vmatprep.subr.mxu0 %v1552
        %1557 = vmatpush1.msra.mxu0 %v1550
        %1558 = vmatprep.subr.mxu0 0.0
        %1559 = vmatpush1.msra.mxu0 0.0
        %1560 = vmatprep.subr.mxu0 0.0
        %1561 = vmatpush1.msra.mxu0 0.0
        %1562 = vmatprep.subr.mxu0 0.0
        %1563 = vmatpush1.msra.mxu0 0.0
        %1564 = vmatprep.subr.mxu0 0.0
        %1565 = vmatpush1.msra.mxu0 0.0
        %1566 = vmatprep.subr.mxu0 0.0
        %1567 = vmatpush1.msra.mxu0 0.0
        %1568 = vmatprep.subr.mxu0 0.0
        %1569 = vmatpush1.msra.mxu0 0.0
        %1570 = vmatprep.subr.mxu0 0.0
        %1571 = vmatpush1.msra.mxu0 0.0
        %1572 = vmatprep.subr.mxu0 0.0
        %1573 = vmatpush1.msra.mxu0 0.0
        %1574 = vmatprep.subr.mxu0 0.0
        %1575 = vmatpush1.msra.mxu0 0.0
        %1576 = vmatprep.subr.mxu0 0.0
        %1577 = vmatpush1.msra.mxu0 0.0
        %1578 = vmatprep.subr.mxu0 0.0
        %1579 = vmatpush1.msra.mxu0 0.0
        %1580 = vmatprep.subr.mxu0 0.0
        %1581 = vmatpush1.msra.mxu0 0.0
        %1582 = vmatprep.subr.mxu0 0.0
        %1583 = vmatpush1.msra.mxu0 0.0
        %1584 = vmatprep.subr.mxu0 0.0
        %1585 = vmatpush1.msra.mxu0 0.0
        %1586 = vmatprep.subr.mxu0 0.0
        %1587 = vmatpush1.msra.mxu0 0.0
        %1588 = vmatprep.subr.mxu0 0.0
        %1589 = vmatpush1.msra.mxu0 0.0
        %1590 = vmatprep.subr.mxu0 0.0
        %1591 = vmatpush1.msra.mxu0 0.0
        %1592 = vmatprep.subr.mxu0 0.0
        %1593 = vmatpush1.msra.mxu0 0.0
        %1594 = vmatprep.subr.mxu0 0.0
        %1595 = vmatpush1.msra.mxu0 0.0
        %1596 = vmatprep.subr.mxu0 0.0
        %1597 = vmatpush1.msra.mxu0 0.0
        %1598 = vmatprep.subr.mxu0 0.0
        %1599 = vmatpush1.msra.mxu0 0.0
        %1600 = vmatprep.subr.mxu0 0.0
        %1601 = vmatpush1.msra.mxu0 0.0
        %1602 = vmatprep.subr.mxu0 0.0
        %1603 = vmatpush1.msra.mxu0 0.0
        %1604 = vmatprep.subr.mxu0 0.0
        %1605 = vmatpush1.msra.mxu0 0.0
        %1606 = vmatprep.subr.mxu0 0.0
        %1607 = vmatpush1.msra.mxu0 0.0
        %1608 = vmatprep.subr.mxu0 0.0
        %1609 = vmatpush1.msra.mxu0 0.0
        %1610 = vmatprep.subr.mxu0 0.0
        %1611 = vmatpush1.msra.mxu0 0.0
        %1612 = vmatprep.subr.mxu0 0.0
        %1613 = vmatpush1.msra.mxu0 0.0
        %1614 = vmatprep.subr.mxu0 0.0
        %1615 = vmatpush1.msra.mxu0 0.0
        %1616 = vmatprep.subr.mxu0 0.0
        %1617 = vmatpush1.msra.mxu0 0.0
        %1618 = vmatprep.subr.mxu0 0.0
        %1619 = vmatpush1.msra.mxu0 0.0
        %1620 = vmatprep.mubr.f32.mxu0 0.0
        %1621 = vmatmul.mubr.f32.gmra.mrb[0].mxu0 %v1548
        %v1622 = vpop.f32.mrb[0].mxu0
        %v1623 = vadd.f32 0.0, %v1622
        %v1624 = vpop.f32.mrb[0].mxu0
        %v1625 = vadd.f32 0.0, %v1624
        %1626 = vdwg.mxu0
        %1627 = vmatprep.subr.mxu0 0.0
        %1628 = vmatpush1.msra.mxu0 %v1554
        %1629 = vmatprep.subr.mxu0 0.0
        %1630 = vmatpush1.msra.mxu0 0.0
        %1631 = vmatprep.subr.mxu0 0.0
        %1632 = vmatpush1.msra.mxu0 0.0
        %1633 = vmatprep.subr.mxu0 0.0
        %1634 = vmatpush1.msra.mxu0 0.0
        %1635 = vmatprep.subr.mxu0 0.0
        %1636 = vmatpush1.msra.mxu0 0.0
        %1637 = vmatprep.subr.mxu0 0.0
        %1638 = vmatpush1.msra.mxu0 0.0
        %1639 = vmatprep.subr.mxu0 0.0
        %1640 = vmatpush1.msra.mxu0 0.0
        %1641 = vmatprep.subr.mxu0 0.0
        %1642 = vmatpush1.msra.mxu0 0.0
        %1643 = vmatprep.subr.mxu0 0.0
        %1644 = vmatpush1.msra.mxu0 0.0
        %1645 = vmatprep.subr.mxu0 0.0
        %1646 = vmatpush1.msra.mxu0 0.0
        %1647 = vmatprep.subr.mxu0 0.0
        %1648 = vmatpush1.msra.mxu0 0.0
        %1649 = vmatprep.subr.mxu0 0.0
        %1650 = vmatpush1.msra.mxu0 0.0
        %1651 = vmatprep.subr.mxu0 0.0
        %1652 = vmatpush1.msra.mxu0 0.0
        %1653 = vmatprep.subr.mxu0 0.0
        %1654 = vmatpush1.msra.mxu0 0.0
        %1655 = vmatprep.subr.mxu0 0.0
        %1656 = vmatpush1.msra.mxu0 0.0
        %1657 = vmatprep.subr.mxu0 0.0
        %1658 = vmatpush1.msra.mxu0 0.0
        %1659 = vmatprep.subr.mxu0 0.0
        %1660 = vmatpush1.msra.mxu0 0.0
        %1661 = vmatprep.subr.mxu0 0.0
        %1662 = vmatpush1.msra.mxu0 0.0
        %1663 = vmatprep.subr.mxu0 0.0
        %1664 = vmatpush1.msra.mxu0 0.0
        %1665 = vmatprep.subr.mxu0 0.0
        %1666 = vmatpush1.msra.mxu0 0.0
        %1667 = vmatprep.subr.mxu0 0.0
        %1668 = vmatpush1.msra.mxu0 0.0
        %1669 = vmatprep.subr.mxu0 0.0
        %1670 = vmatpush1.msra.mxu0 0.0
        %1671 = vmatprep.subr.mxu0 0.0
        %1672 = vmatpush1.msra.mxu0 0.0
        %1673 = vmatprep.subr.mxu0 0.0
        %1674 = vmatpush1.msra.mxu0 0.0
        %1675 = vmatprep.subr.mxu0 0.0
        %1676 = vmatpush1.msra.mxu0 0.0
        %1677 = vmatprep.subr.mxu0 0.0
        %1678 = vmatpush1.msra.mxu0 0.0
        %1679 = vmatprep.subr.mxu0 0.0
        %1680 = vmatpush1.msra.mxu0 0.0
        %1681 = vmatprep.subr.mxu0 0.0
        %1682 = vmatpush1.msra.mxu0 0.0
        %1683 = vmatprep.subr.mxu0 0.0
        %1684 = vmatpush1.msra.mxu0 0.0
        %1685 = vmatprep.subr.mxu0 0.0
        %1686 = vmatpush1.msra.mxu0 0.0
        %1687 = vmatprep.subr.mxu0 0.0
        %1688 = vmatpush1.msra.mxu0 0.0
        %1689 = vmatprep.subr.mxu0 0.0
        %1690 = vmatpush1.msra.mxu0 0.0
        %1691 = vmatprep.mubr.f32.mxu0 0.0
        %1692 = vmatmul.mubr.f32.gmra.mrb[0].mxu0 %v1548
        %v1693 = vpop.f32.mrb[0].mxu0
        %v1694 = vadd.f32 0.0, %v1693
        %v1695 = vpop.f32.mrb[0].mxu0
        %1696 = vdwg.mxu0
        %v1697 = vadd.f32 %v1528, %v1623
        %v1698 = vadd.f32 %v1529, %v1625
        %v1699 = vadd.f32 %v1530, %v1694
        %v1700 = vld [vmem:[%s2] sm:$0xff]
        %1702 = vset.pattern.permute.xlu0 0
        %1703 = vperm.xlu0 %1702, %v1700
        %v1704 = vpop.permute.xlu0 %1703
        %v1706 = vadd.f32 %v1697, %v1704
        %v1707 = vadd.f32 %v1698, %v1704
        %v1708 = vadd.f32 %v1699, %v1704
        %1709 = vst [vmem:[%s187] sm:$0xff] %v1706
        %1710 = vst [vmem:[%s187 + $0x8] sm:$0xff] %v1707
        %vm1711 = vcmask 261120
        %1712 = vst.msk [vmem:[%s187 + $0x10] sm:$0xff] %vm1711, %v1708
        %s1713 = sand.u32 %s109, 1
        %s1714 = scalar_lea.sflag [#allocation3], %s1713
        %s1715 = sand.u32 %s109, 1
        %s1716 = smul.addr %s1715, 24
        %s1717 = scalar_lea.vmem [#allocation2], %s1716
        // Predicated region
        $region33: #{tpu_custom_call.1} parent=31 // pred_check
          %p1718 = pneg %p119
        $region34: #{tpu_custom_call.1} parent=31 // pred_check_branch
          %1720 = sbr.rel (%p1718) target = $region36
        $region35: #{tpu_custom_call.1} parent=31 // pred_region
          %s1721 = smul.u32 3, %s22
          %s1723 = ssub.s32 384, 384
          %1724 = vsyncadd %s1714, %s1723
          %s1725 = smul.addr %s21, 3
          %s1726 = sadd.s32 %s1721, %s1725
          %s1727 = smul.addr %s1726, 128
          %s1728 = scalar_lea.hbm %s3, %s1727
          %s1730 = sshll.u32 %s1717, 4
          %s1731 = int_to_ptr.vmem [resolvable:$true] %s1730
          %1733 = dma.vmem_to_hbm [thread:$0]  %s1731, 384, %s1728, %s1714
        $region36: #{tpu_custom_call.1} parent=31 // pred_fallthru
          _
      $region32: #{tpu_custom_call.1} parent=5 // pred_fallthru
        _
      %p1734 = scmp.le.s32.totalorder 2, %s12
      // Predicated region
      $region37: #{tpu_custom_call.1} parent=5 // pred_check
        %p1735 = pneg %p1734
      $region38: #{tpu_custom_call.1} parent=5 // pred_check_branch
        %1737 = sbr.rel (%p1735) target = $region40
      $region39: #{tpu_custom_call.1} parent=5 // pred_region
        %s1738 = ssub.s32 %s12, 2
        // Predicated region
        $region41: #{tpu_custom_call.1} parent=39 // pred_check
          %p1739 = pneg %p125
        $region42: #{tpu_custom_call.1} parent=39 // pred_check_branch
          %1741 = sbr.rel (%p1739) target = $region44
        $region43: #{tpu_custom_call.1} parent=39 // pred_region
          %s1742 = sand.u32 %s110, 1
          %s1743 = scalar_lea.sflag [#allocation3], %s1742
          %s1744 = sand.u32 %s110, 1
          %s1745 = smul.addr %s1744, 24
          %s1746 = scalar_lea.vmem [#allocation2], %s1745
          %1747 = dma.done %s1743, 384
        $region44: #{tpu_custom_call.1} parent=39 // pred_fallthru
          _
      $region40: #{tpu_custom_call.1} parent=5 // pred_fallthru
        _
    $region6: #{tpu_custom_call.1} parent=1 // loop_footer
      %s16 = sadd.s32 1, %s12
    $region7: #{tpu_custom_call.1} parent=1 // loop_footer_branch
      %11 = sbr.rel target = $region3
    $region8: #{tpu_custom_call.1} parent=1 // loop_exit
      _
    %1748 = vsyncpa [#allocation3], 1
    %s1749 = scalar_lea.sflag [#allocation3], 1
    %1750 = vsyncpa %s1749, 1

</llo_original>
